<compile_context>
chip_gen: v7x
topology: tpu7x:2x2x1
jax: 0.10.0
libtpu: 0.0.40
codegen_flags: <defaults>
</compile_context>

<pallas_src>
import jax
import jax.numpy as jnp
from jax.experimental import pallas as pl
from jax.experimental.pallas import tpu as pltpu

LANE = 128


def _round_up(v, m):
    return ((v + m - 1) // m) * m


def _make_enc_dec_kernel(d_out, pack, rows_per_block):
    """Kernel for one row tile: x @ w1 -> relu -> @ w2 -> log_softmax -> pack."""

    def kernel(x_ref, w1_ref, b1_ref, w2_ref, b2_ref, o_ref, lp_ref):
        # first_lin + ReLU (f32 accumulation on the MXU).
        h = jnp.dot(x_ref[...], w1_ref[...], preferred_element_type=jnp.float32)
        h = jnp.maximum(h + b1_ref[...], 0.0)
        # TODO(synk): dropout is identity in eval mode (training=False); no RNG applied.
        # final_lin on the real d_out columns only.
        z = jnp.dot(h, w2_ref[...], preferred_element_type=jnp.float32)
        z = z + b2_ref[...]
        # Numerically stable log_softmax over the feature axis (dim=1).
        m = jnp.max(z, axis=-1, keepdims=True)
        s = z - m
        lse = jnp.log(jnp.sum(jnp.exp(s), axis=-1, keepdims=True))
        lp = (s - lse).astype(o_ref.dtype)                       # (tm, d_out)

        if pack == 1:
            o_ref[...] = lp
        else:
            # Lane-dense repack: fold `pack` consecutive logical rows into the
            # 128 lanes of one output row.  Strided VMEM reads + lane-offset
            # stores are XLU / load-store slot work, which has slack in this
            # HBM-bound kernel.
            lp_ref[...] = lp
            for p in range(pack):                                # static unroll
                chunk = lp_ref[pl.ds(p, rows_per_block, stride=pack), :]
                o_ref[:, p * d_out:(p + 1) * d_out] = chunk

    return kernel


def only_enc_dec_forward(x, w1, b1, w2, b2, *, block_rows=512):
    """only_EncDec forward: log_softmax(relu(x @ w1 + b1) @ w2 + b2, axis=1).

    x: [N, d_in]; w1: [d_in, d_hid]; b1: [1, d_hid]; w2: [d_hid, d_out]; b2: [1, d_out].
    Weights are stored pre-transposed vs. torch nn.Linear's [out, in] layout so
    the kernel computes row_tile @ W directly on the MXU.  Returns [N, d_out] f32.
    """
    N, d_in = x.shape
    d_hid = w1.shape[1]
    d_out = w2.shape[1]

    # Packed lane-dense output when d_out divides 128; otherwise fall back to a
    # direct [N, d_out] output (narrow stores, but still correct).
    if d_out < LANE and LANE % d_out == 0:
        pack = LANE // d_out
    else:
        pack = 1

    # Row tile: ~512 rows (measured ~85% of HBM roofline), shrunk for small N.
    # row_align keeps the packed output block (tm//pack, 128) on the (8, 128) grid.
    row_align = 8 * pack
    tm = min(_round_up(block_rows, row_align), _round_up(N, row_align))
    grid = (pl.cdiv(N, tm),)            # ragged last block handled by Pallas

    rows_out = pl.cdiv(N, pack)         # packed output rows
    out_shape = jax.ShapeDtypeStruct((rows_out, pack * d_out), jnp.float32)

    kernel = _make_enc_dec_kernel(d_out, pack, tm // pack)

    out = pl.pallas_call(
        kernel,
        out_shape=out_shape,
        grid=grid,
        in_specs=[
            pl.BlockSpec((tm, d_in), lambda i: (i, 0)),
            # Grid-invariant weights/biases (constant index_map -> fetched once).
            pl.BlockSpec((d_in, d_hid), lambda i: (0, 0)),
            pl.BlockSpec((1, d_hid), lambda i: (0, 0)),
            pl.BlockSpec((d_hid, d_out), lambda i: (0, 0)),
            pl.BlockSpec((1, d_out), lambda i: (0, 0)),
        ],
        out_specs=pl.BlockSpec((tm // pack, pack * d_out), lambda i: (i, 0)),
        scratch_shapes=[pltpu.VMEM((tm, d_out), jnp.float32)],
        compiler_params=pltpu.CompilerParams(
            dimension_semantics=("parallel",),
        ),
    )(x, w1, b1, w2, b2)

    # Free contiguous reshape back to [*, d_out]; slice only if N % pack != 0.
    out = out.reshape(-1, d_out)
    return out if out.shape[0] == N else out[:N]


def reference_forward(x, w1, b1, w2, b2):
    h = jnp.maximum(x @ w1 + b1, 0.0)
    z = h @ w2 + b2
    return jax.nn.log_softmax(z, axis=1)


if __name__ == "__main__":
    # Use full-precision f32 matmuls in both the XLA reference and the kernel
    # trace so the comparison is apples-to-apples.
    jax.config.update("jax_default_matmul_precision", "highest")

    # Small shapes consistent with only_EncDec(input_dim, output_dim, hidden_dim).
    N = 128
    input_dim = 16
    hidden_dim = 32
    output_dim = 8

    key = jax.random.PRNGKey(0)
    kx, kw1, kb1, kw2, kb2, ke = jax.random.split(key, 6)

    x = jax.random.normal(kx, (N, input_dim), dtype=jnp.float32)
    # edge_index is unused by the reference forward pass (kept for API parity).
    edge_index = jax.random.randint(ke, (2, 4 * N), 0, N, dtype=jnp.int32)

    def uniform_init(k, shape, fan_in):
        bound = 1.0 / jnp.sqrt(fan_in)
        return jax.random.uniform(k, shape, jnp.float32, -bound, bound)

    # Stored pre-transposed relative to torch nn.Linear's [out, in] weight layout.
    w1 = uniform_init(kw1, (input_dim, hidden_dim), input_dim)
    b1 = uniform_init(kb1, (1, hidden_dim), input_dim)
    w2 = uniform_init(kw2, (hidden_dim, output_dim), hidden_dim)
    b2 = uniform_init(kb2, (1, output_dim), hidden_dim)

    out = only_enc_dec_forward(x, w1, b1, w2, b2)
    out = jax.block_until_ready(out)

    ref = reference_forward(x, w1, b1, w2, b2)
    assert out.shape == (N, output_dim), out.shape
    max_err = float(jnp.max(jnp.abs(out - ref)))
    assert max_err < 1e-4, f"max abs error {max_err}"

    print("KERNEL_OK")
</pallas_src>

<mosaic_0001>
module attributes {stable_mosaic.version = 11 : i64} {
  func.func @kernel(%arg0: i32, %arg1: memref<128x16xf32, #tpu.memory_space<vmem>>, %arg2: memref<16x32xf32, #tpu.memory_space<vmem>>, %arg3: memref<1x32xf32, #tpu.memory_space<vmem>>, %arg4: memref<32x8xf32, #tpu.memory_space<vmem>>, %arg5: memref<1x8xf32, #tpu.memory_space<vmem>>, %arg6: memref<8x128xf32, #tpu.memory_space<vmem>>, %arg7: memref<128x8xf32, #tpu.memory_space<vmem>>) attributes {dimension_semantics = [#tpu.dimension_semantics<parallel>], iteration_bounds = array<i64: 1>, scalar_prefetch = 0 : i64, scratch_operands = 1 : i64, tpu.core_type = #tpu.core_type<tc>, window_params = [{transform_indices = @transform_0, window_bounds = array<i64: 128, 16>}, {pipeline_mode = #tpu.pipeline_mode<synchronous>, transform_indices = @transform_1, window_bounds = array<i64: 16, 32>}, {pipeline_mode = #tpu.pipeline_mode<synchronous>, transform_indices = @transform_2, window_bounds = array<i64: 1, 32>}, {pipeline_mode = #tpu.pipeline_mode<synchronous>, transform_indices = @transform_3, window_bounds = array<i64: 32, 8>}, {pipeline_mode = #tpu.pipeline_mode<synchronous>, transform_indices = @transform_4, window_bounds = array<i64: 1, 8>}, {transform_indices = @transform_5, window_bounds = array<i64: 8, 128>}]} {
    %c0 = arith.constant 0 : index
    %c0_0 = arith.constant 0 : index
    %0 = vector.load %arg1[%c0, %c0_0] : memref<128x16xf32, #tpu.memory_space<vmem>>, vector<128x16xf32>
    %c0_1 = arith.constant 0 : index
    %c0_2 = arith.constant 0 : index
    %1 = vector.load %arg2[%c0_1, %c0_2] : memref<16x32xf32, #tpu.memory_space<vmem>>, vector<16x32xf32>
    %cst = arith.constant dense<0.000000e+00> : vector<128x32xf32>
    %2 = tpu.matmul %0, %1, %cst {dimension_numbers = #tpu.dot_dimension_numbers<[1], [0], [0], [1], [0, 0, 1, 1], [], []>, precision = #tpu.contract_precision<fp32>} : vector<128x16xf32>, vector<16x32xf32>, vector<128x32xf32> -> vector<128x32xf32>
    %c0_3 = arith.constant 0 : index
    %c0_4 = arith.constant 0 : index
    %3 = vector.load %arg3[%c0_3, %c0_4] : memref<1x32xf32, #tpu.memory_space<vmem>>, vector<1x32xf32>
    %4 = vector.broadcast %3 : vector<1x32xf32> to vector<128x32xf32>
    %5 = arith.addf %2, %4 : vector<128x32xf32>
    %cst_5 = arith.constant 0.000000e+00 : f32
    %6 = vector.broadcast %cst_5 : f32 to vector<128x32xf32>
    %7 = arith.maximumf %5, %6 : vector<128x32xf32>
    %c0_6 = arith.constant 0 : index
    %c0_7 = arith.constant 0 : index
    %8 = vector.load %arg4[%c0_6, %c0_7] : memref<32x8xf32, #tpu.memory_space<vmem>>, vector<32x8xf32>
    %cst_8 = arith.constant dense<0.000000e+00> : vector<128x8xf32>
    %9 = tpu.matmul %7, %8, %cst_8 {dimension_numbers = #tpu.dot_dimension_numbers<[1], [0], [0], [1], [0, 0, 1, 1], [], []>, precision = #tpu.contract_precision<fp32>} : vector<128x32xf32>, vector<32x8xf32>, vector<128x8xf32> -> vector<128x8xf32>
    %c0_9 = arith.constant 0 : index
    %c0_10 = arith.constant 0 : index
    %10 = vector.load %arg5[%c0_9, %c0_10] : memref<1x8xf32, #tpu.memory_space<vmem>>, vector<1x8xf32>
    %11 = vector.broadcast %10 : vector<1x8xf32> to vector<128x8xf32>
    %12 = arith.addf %9, %11 : vector<128x8xf32>
    %cst_11 = arith.constant dense<0xFF800000> : vector<128xf32>
    %13 = vector.multi_reduction <maximumf>, %12, %cst_11 [1] : vector<128x8xf32> to vector<128xf32>
    %14 = vector.shape_cast %13 : vector<128xf32> to vector<128x1xf32>
    %15 = vector.broadcast %14 : vector<128x1xf32> to vector<128x8xf32>
    %16 = arith.subf %12, %15 : vector<128x8xf32>
    %17 = math.exp %16 : vector<128x8xf32>
    %cst_12 = arith.constant dense<0.000000e+00> : vector<128xf32>
    %18 = vector.multi_reduction <add>, %17, %cst_12 [1] : vector<128x8xf32> to vector<128xf32>
    %19 = vector.shape_cast %18 : vector<128xf32> to vector<128x1xf32>
    %20 = math.log %19 : vector<128x1xf32>
    %21 = vector.broadcast %20 : vector<128x1xf32> to vector<128x8xf32>
    %22 = arith.subf %16, %21 : vector<128x8xf32>
    %c0_13 = arith.constant 0 : index
    %c0_14 = arith.constant 0 : index
    %23 = vector.load %arg7[%c0_13, %c0_14] : memref<128x8xf32, #tpu.memory_space<vmem>>, vector<128x8xf32>
    tpu.vector_store %arg7[%c0_13, %c0_14], %22 {strides = array<i32>} : memref<128x8xf32, #tpu.memory_space<vmem>>, vector<128x8xf32>,
    %c0_15 = arith.constant 0 : index
    %c0_16 = arith.constant 0 : index
    %24 = tpu.strided_load %arg7[%c0_15, %c0_16] {strides = array<i32: 16, 1>} : memref<128x8xf32, #tpu.memory_space<vmem>>, vector<8x8xf32>
    %c0_17 = arith.constant 0 : index
    %c0_18 = arith.constant 0 : index
    %25 = vector.load %arg6[%c0_17, %c0_18] : memref<8x128xf32, #tpu.memory_space<vmem>>, vector<8x8xf32>
    tpu.vector_store %arg6[%c0_17, %c0_18], %24 {strides = array<i32>} : memref<8x128xf32, #tpu.memory_space<vmem>>, vector<8x8xf32>,
    %c1 = arith.constant 1 : index
    %c0_19 = arith.constant 0 : index
    %26 = tpu.strided_load %arg7[%c1, %c0_19] {strides = array<i32: 16, 1>} : memref<128x8xf32, #tpu.memory_space<vmem>>, vector<8x8xf32>
    %c0_20 = arith.constant 0 : index
    %c8 = arith.constant 8 : index
    %27 = vector.load %arg6[%c0_20, %c8] : memref<8x128xf32, #tpu.memory_space<vmem>>, vector<8x8xf32>
    tpu.vector_store %arg6[%c0_20, %c8], %26 {strides = array<i32>} : memref<8x128xf32, #tpu.memory_space<vmem>>, vector<8x8xf32>,
    %c2 = arith.constant 2 : index
    %c0_21 = arith.constant 0 : index
    %28 = tpu.strided_load %arg7[%c2, %c0_21] {strides = array<i32: 16, 1>} : memref<128x8xf32, #tpu.memory_space<vmem>>, vector<8x8xf32>
    %c0_22 = arith.constant 0 : index
    %c16 = arith.constant 16 : index
    %29 = vector.load %arg6[%c0_22, %c16] : memref<8x128xf32, #tpu.memory_space<vmem>>, vector<8x8xf32>
    tpu.vector_store %arg6[%c0_22, %c16], %28 {strides = array<i32>} : memref<8x128xf32, #tpu.memory_space<vmem>>, vector<8x8xf32>,
    %c3 = arith.constant 3 : index
    %c0_23 = arith.constant 0 : index
    %30 = tpu.strided_load %arg7[%c3, %c0_23] {strides = array<i32: 16, 1>} : memref<128x8xf32, #tpu.memory_space<vmem>>, vector<8x8xf32>
    %c0_24 = arith.constant 0 : index
    %c24 = arith.constant 24 : index
    %31 = vector.load %arg6[%c0_24, %c24] : memref<8x128xf32, #tpu.memory_space<vmem>>, vector<8x8xf32>
    tpu.vector_store %arg6[%c0_24, %c24], %30 {strides = array<i32>} : memref<8x128xf32, #tpu.memory_space<vmem>>, vector<8x8xf32>,
    %c4 = arith.constant 4 : index
    %c0_25 = arith.constant 0 : index
    %32 = tpu.strided_load %arg7[%c4, %c0_25] {strides = array<i32: 16, 1>} : memref<128x8xf32, #tpu.memory_space<vmem>>, vector<8x8xf32>
    %c0_26 = arith.constant 0 : index
    %c32 = arith.constant 32 : index
    %33 = vector.load %arg6[%c0_26, %c32] : memref<8x128xf32, #tpu.memory_space<vmem>>, vector<8x8xf32>
    tpu.vector_store %arg6[%c0_26, %c32], %32 {strides = array<i32>} : memref<8x128xf32, #tpu.memory_space<vmem>>, vector<8x8xf32>,
    %c5 = arith.constant 5 : index
    %c0_27 = arith.constant 0 : index
    %34 = tpu.strided_load %arg7[%c5, %c0_27] {strides = array<i32: 16, 1>} : memref<128x8xf32, #tpu.memory_space<vmem>>, vector<8x8xf32>
    %c0_28 = arith.constant 0 : index
    %c40 = arith.constant 40 : index
    %35 = vector.load %arg6[%c0_28, %c40] : memref<8x128xf32, #tpu.memory_space<vmem>>, vector<8x8xf32>
    tpu.vector_store %arg6[%c0_28, %c40], %34 {strides = array<i32>} : memref<8x128xf32, #tpu.memory_space<vmem>>, vector<8x8xf32>,
    %c6 = arith.constant 6 : index
    %c0_29 = arith.constant 0 : index
    %36 = tpu.strided_load %arg7[%c6, %c0_29] {strides = array<i32: 16, 1>} : memref<128x8xf32, #tpu.memory_space<vmem>>, vector<8x8xf32>
    %c0_30 = arith.constant 0 : index
    %c48 = arith.constant 48 : index
    %37 = vector.load %arg6[%c0_30, %c48] : memref<8x128xf32, #tpu.memory_space<vmem>>, vector<8x8xf32>
    tpu.vector_store %arg6[%c0_30, %c48], %36 {strides = array<i32>} : memref<8x128xf32, #tpu.memory_space<vmem>>, vector<8x8xf32>,
    %c7 = arith.constant 7 : index
    %c0_31 = arith.constant 0 : index
    %38 = tpu.strided_load %arg7[%c7, %c0_31] {strides = array<i32: 16, 1>} : memref<128x8xf32, #tpu.memory_space<vmem>>, vector<8x8xf32>
    %c0_32 = arith.constant 0 : index
    %c56 = arith.constant 56 : index
    %39 = vector.load %arg6[%c0_32, %c56] : memref<8x128xf32, #tpu.memory_space<vmem>>, vector<8x8xf32>
    tpu.vector_store %arg6[%c0_32, %c56], %38 {strides = array<i32>} : memref<8x128xf32, #tpu.memory_space<vmem>>, vector<8x8xf32>,
    %c8_33 = arith.constant 8 : index
    %c0_34 = arith.constant 0 : index
    %40 = tpu.strided_load %arg7[%c8_33, %c0_34] {strides = array<i32: 16, 1>} : memref<128x8xf32, #tpu.memory_space<vmem>>, vector<8x8xf32>
    %c0_35 = arith.constant 0 : index
    %c64 = arith.constant 64 : index
    %41 = vector.load %arg6[%c0_35, %c64] : memref<8x128xf32, #tpu.memory_space<vmem>>, vector<8x8xf32>
    tpu.vector_store %arg6[%c0_35, %c64], %40 {strides = array<i32>} : memref<8x128xf32, #tpu.memory_space<vmem>>, vector<8x8xf32>,
    %c9 = arith.constant 9 : index
    %c0_36 = arith.constant 0 : index
    %42 = tpu.strided_load %arg7[%c9, %c0_36] {strides = array<i32: 16, 1>} : memref<128x8xf32, #tpu.memory_space<vmem>>, vector<8x8xf32>
    %c0_37 = arith.constant 0 : index
    %c72 = arith.constant 72 : index
    %43 = vector.load %arg6[%c0_37, %c72] : memref<8x128xf32, #tpu.memory_space<vmem>>, vector<8x8xf32>
    tpu.vector_store %arg6[%c0_37, %c72], %42 {strides = array<i32>} : memref<8x128xf32, #tpu.memory_space<vmem>>, vector<8x8xf32>,
    %c10 = arith.constant 10 : index
    %c0_38 = arith.constant 0 : index
    %44 = tpu.strided_load %arg7[%c10, %c0_38] {strides = array<i32: 16, 1>} : memref<128x8xf32, #tpu.memory_space<vmem>>, vector<8x8xf32>
    %c0_39 = arith.constant 0 : index
    %c80 = arith.constant 80 : index
    %45 = vector.load %arg6[%c0_39, %c80] : memref<8x128xf32, #tpu.memory_space<vmem>>, vector<8x8xf32>
    tpu.vector_store %arg6[%c0_39, %c80], %44 {strides = array<i32>} : memref<8x128xf32, #tpu.memory_space<vmem>>, vector<8x8xf32>,
    %c11 = arith.constant 11 : index
    %c0_40 = arith.constant 0 : index
    %46 = tpu.strided_load %arg7[%c11, %c0_40] {strides = array<i32: 16, 1>} : memref<128x8xf32, #tpu.memory_space<vmem>>, vector<8x8xf32>
    %c0_41 = arith.constant 0 : index
    %c88 = arith.constant 88 : index
    %47 = vector.load %arg6[%c0_41, %c88] : memref<8x128xf32, #tpu.memory_space<vmem>>, vector<8x8xf32>
    tpu.vector_store %arg6[%c0_41, %c88], %46 {strides = array<i32>} : memref<8x128xf32, #tpu.memory_space<vmem>>, vector<8x8xf32>,
    %c12 = arith.constant 12 : index
    %c0_42 = arith.constant 0 : index
    %48 = tpu.strided_load %arg7[%c12, %c0_42] {strides = array<i32: 16, 1>} : memref<128x8xf32, #tpu.memory_space<vmem>>, vector<8x8xf32>
    %c0_43 = arith.constant 0 : index
    %c96 = arith.constant 96 : index
    %49 = vector.load %arg6[%c0_43, %c96] : memref<8x128xf32, #tpu.memory_space<vmem>>, vector<8x8xf32>
    tpu.vector_store %arg6[%c0_43, %c96], %48 {strides = array<i32>} : memref<8x128xf32, #tpu.memory_space<vmem>>, vector<8x8xf32>,
    %c13 = arith.constant 13 : index
    %c0_44 = arith.constant 0 : index
    %50 = tpu.strided_load %arg7[%c13, %c0_44] {strides = array<i32: 16, 1>} : memref<128x8xf32, #tpu.memory_space<vmem>>, vector<8x8xf32>
    %c0_45 = arith.constant 0 : index
    %c104 = arith.constant 104 : index
    %51 = vector.load %arg6[%c0_45, %c104] : memref<8x128xf32, #tpu.memory_space<vmem>>, vector<8x8xf32>
    tpu.vector_store %arg6[%c0_45, %c104], %50 {strides = array<i32>} : memref<8x128xf32, #tpu.memory_space<vmem>>, vector<8x8xf32>,
    %c14 = arith.constant 14 : index
    %c0_46 = arith.constant 0 : index
    %52 = tpu.strided_load %arg7[%c14, %c0_46] {strides = array<i32: 16, 1>} : memref<128x8xf32, #tpu.memory_space<vmem>>, vector<8x8xf32>
    %c0_47 = arith.constant 0 : index
    %c112 = arith.constant 112 : index
    %53 = vector.load %arg6[%c0_47, %c112] : memref<8x128xf32, #tpu.memory_space<vmem>>, vector<8x8xf32>
    tpu.vector_store %arg6[%c0_47, %c112], %52 {strides = array<i32>} : memref<8x128xf32, #tpu.memory_space<vmem>>, vector<8x8xf32>,
    %c15 = arith.constant 15 : index
    %c0_48 = arith.constant 0 : index
    %54 = tpu.strided_load %arg7[%c15, %c0_48] {strides = array<i32: 16, 1>} : memref<128x8xf32, #tpu.memory_space<vmem>>, vector<8x8xf32>
    %c0_49 = arith.constant 0 : index
    %c120 = arith.constant 120 : index
    %55 = vector.load %arg6[%c0_49, %c120] : memref<8x128xf32, #tpu.memory_space<vmem>>, vector<8x8xf32>
    tpu.vector_store %arg6[%c0_49, %c120], %54 {strides = array<i32>} : memref<8x128xf32, #tpu.memory_space<vmem>>, vector<8x8xf32>,
    return
  }
  func.func @transform_0(%arg0: i32) -> (i32, i32) {
    %c0_i32 = arith.constant 0 : i32
    %c0_i32_0 = arith.constant 0 : i32
    return %arg0, %c0_i32 : i32, i32
  }
  func.func @transform_1(%arg0: i32) -> (i32, i32) {
    %c0_i32 = arith.constant 0 : i32
    %c0_i32_0 = arith.constant 0 : i32
    %c0_i32_1 = arith.constant 0 : i32
    return %c0_i32, %c0_i32_0 : i32, i32
  }
  func.func @transform_2(%arg0: i32) -> (i32, i32) {
    %c0_i32 = arith.constant 0 : i32
    %c0_i32_0 = arith.constant 0 : i32
    %c0_i32_1 = arith.constant 0 : i32
    return %c0_i32, %c0_i32_0 : i32, i32
  }
  func.func @transform_3(%arg0: i32) -> (i32, i32) {
    %c0_i32 = arith.constant 0 : i32
    %c0_i32_0 = arith.constant 0 : i32
    %c0_i32_1 = arith.constant 0 : i32
    return %c0_i32, %c0_i32_0 : i32, i32
  }
  func.func @transform_4(%arg0: i32) -> (i32, i32) {
    %c0_i32 = arith.constant 0 : i32
    %c0_i32_0 = arith.constant 0 : i32
    %c0_i32_1 = arith.constant 0 : i32
    return %c0_i32, %c0_i32_0 : i32, i32
  }
  func.func @transform_5(%arg0: i32) -> (i32, i32) {
    %c0_i32 = arith.constant 0 : i32
    %c0_i32_0 = arith.constant 0 : i32
    return %arg0, %c0_i32 : i32, i32
  }
}

</mosaic_0001>

<llo_original>
// kernel: tpu_custom_call.1
$region0: #{tpu_custom_call.1}
  #allocation0 [shape = 'u32[]', space=smem, size = 0x4, offset = 0x4, fixed_abs, tag = 'smem constant byte address 0x4 - core index']
  #allocation1 [shape = 'u32[144,128]{1,0:T(1,128)}', space=vmem, size = 0x12000, scoped, tag = 'internal scratch']
  #allocation2 [shape = 'f32[128,8]{1,0:T(8,128)}', space=vmem, size = 0x10000, scoped, tag = 'scratch operand']
  %s0 = inlined_call_operand.vmem [shape: f32[128,16], index: 0, kind: input, shape index: {}]
  %s1 = inlined_call_operand.vmem [shape: f32[16,32], index: 1, kind: input, shape index: {}]
  %s2 = inlined_call_operand.vmem [shape: f32[1,32], index: 2, kind: input, shape index: {}]
  %s3 = inlined_call_operand.vmem [shape: f32[32,8], index: 3, kind: input, shape index: {}]
  %s4 = inlined_call_operand.vmem [shape: f32[1,8], index: 4, kind: input, shape index: {}]
  %s5 = inlined_call_operand.hbm [shape: f32[8,128], index: 5, kind: output, shape index: {}]
  %s6 = sld [smem:[#allocation0]]
  $region30: #{tpu_custom_call.1} parent=0
    _
  %s8 = ssub.s32 1, %s6
  %s9 = scalar_select 0, %s8, %s6
  $region1: #{tpu_custom_call.1} parent=0
    #allocation3 [shape = 'u8[4096]{0}', space=vmem, size = 0x1000, scoped, tag = 'output window, operand 0, single buffered']
    #allocation4 [shape = 's32[1]{0}', space=sflag, size = 0x4, scoped, tag = 'scoped memory for tpu_custom_call.1']
    %10 = vsyncpa [#allocation4], 0
    // Predicated region
    $region2: #{tpu_custom_call.1} parent=1 // pred_check
      _
    $region3: #{tpu_custom_call.1} parent=1 // pred_check_branch
      %12 = sbr.rel (0) target = $region5
    $region4: #{tpu_custom_call.1} parent=1 // pred_region
      _
    $region5: #{tpu_custom_call.1} parent=1 // pred_fallthru
      _
    // Predicated region
    $region6: #{tpu_custom_call.1} parent=1 // pred_check
      _
    $region7: #{tpu_custom_call.1} parent=1 // pred_check_branch
      %14 = sbr.rel (0) target = $region9
    $region8: #{tpu_custom_call.1} parent=1 // pred_region
      _
    $region9: #{tpu_custom_call.1} parent=1 // pred_fallthru
      _
    // Predicated region
    $region10: #{tpu_custom_call.1} parent=1 // pred_check
      _
    $region11: #{tpu_custom_call.1} parent=1 // pred_check_branch
      %16 = sbr.rel (0) target = $region13
    $region12: #{tpu_custom_call.1} parent=1 // pred_region
      _
    $region13: #{tpu_custom_call.1} parent=1 // pred_fallthru
      _
    // Predicated region
    $region14: #{tpu_custom_call.1} parent=1 // pred_check
      _
    $region15: #{tpu_custom_call.1} parent=1 // pred_check_branch
      %18 = sbr.rel (0) target = $region17
    $region16: #{tpu_custom_call.1} parent=1 // pred_region
      _
    $region17: #{tpu_custom_call.1} parent=1 // pred_fallthru
      _
    // Predicated region
    $region18: #{tpu_custom_call.1} parent=1 // pred_check
      _
    $region19: #{tpu_custom_call.1} parent=1 // pred_check_branch
      %20 = sbr.rel (0) target = $region21
    $region20: #{tpu_custom_call.1} parent=1 // pred_region
      _
    $region21: #{tpu_custom_call.1} parent=1 // pred_fallthru
      _
    %v21 = vld [vmem:[%s0] sm:$0xff]
    %v22 = vld [vmem:[%s0 + $0x8] sm:$0xff]
    %v23 = vld [vmem:[%s0 + $0x10] sm:$0xff]
    %v24 = vld [vmem:[%s0 + $0x18] sm:$0xff]
    %v25 = vld [vmem:[%s0 + $0x20] sm:$0xff]
    %v26 = vld [vmem:[%s0 + $0x28] sm:$0xff]
    %v27 = vld [vmem:[%s0 + $0x30] sm:$0xff]
    %v28 = vld [vmem:[%s0 + $0x38] sm:$0xff]
    %v29 = vld [vmem:[%s0 + $0x40] sm:$0xff]
    %v30 = vld [vmem:[%s0 + $0x48] sm:$0xff]
    %v31 = vld [vmem:[%s0 + $0x50] sm:$0xff]
    %v32 = vld [vmem:[%s0 + $0x58] sm:$0xff]
    %v33 = vld [vmem:[%s0 + $0x60] sm:$0xff]
    %v34 = vld [vmem:[%s0 + $0x68] sm:$0xff]
    %v35 = vld [vmem:[%s0 + $0x70] sm:$0xff]
    %v36 = vld [vmem:[%s0 + $0x78] sm:$0xff]
    %v37 = vld [vmem:[%s1] sm:$0xff]
    %v38 = vld [vmem:[%s1 + $0x8] sm:$0xff]
    %v39 = vld [vmem:[%s2] sm:$0x1]
    %v41 = vlaneseq
    %v42 = vshrl.u32 %v41, 7
    %v43 = vsub.s32 0, %v42
    %v44 = vrot.slane %v39, %v43
    %vm46 = vcmask 130048
    %v48 = vsel %vm46, %v21, 0
    %v51 = vsel %vm46, %v22, 0
    %v54 = vsel %vm46, %v23, 0
    %v57 = vsel %vm46, %v24, 0
    %v60 = vsel %vm46, %v25, 0
    %v63 = vsel %vm46, %v26, 0
    %v66 = vsel %vm46, %v27, 0
    %v69 = vsel %vm46, %v28, 0
    %v72 = vsel %vm46, %v29, 0
    %v75 = vsel %vm46, %v30, 0
    %v78 = vsel %vm46, %v31, 0
    %v81 = vsel %vm46, %v32, 0
    %v84 = vsel %vm46, %v33, 0
    %v87 = vsel %vm46, %v34, 0
    %v90 = vsel %vm46, %v35, 0
    %v93 = vsel %vm46, %v36, 0
    %95 = vmatprep.subr.mxu0 0.0
    %v96 = vand.u32 %v37, 4294901760
    %97 = vmatpush1.msra.mxu0 %v96
    %98 = vmatprep.subr.mxu0 0.0
    %v99 = vand.u32 %v38, 4294901760
    %100 = vmatpush1.msra.mxu0 %v99
    %101 = vmatprep.subr.mxu0 0.0
    %102 = vmatpush1.msra.mxu0 0.0
    %103 = vmatprep.subr.mxu0 0.0
    %104 = vmatpush1.msra.mxu0 0.0
    %105 = vmatprep.subr.mxu0 0.0
    %106 = vmatpush1.msra.mxu0 0.0
    %107 = vmatprep.subr.mxu0 0.0
    %108 = vmatpush1.msra.mxu0 0.0
    %109 = vmatprep.subr.mxu0 0.0
    %110 = vmatpush1.msra.mxu0 0.0
    %111 = vmatprep.subr.mxu0 0.0
    %112 = vmatpush1.msra.mxu0 0.0
    %113 = vmatprep.subr.mxu0 0.0
    %114 = vmatpush1.msra.mxu0 0.0
    %115 = vmatprep.subr.mxu0 0.0
    %116 = vmatpush1.msra.mxu0 0.0
    %117 = vmatprep.subr.mxu0 0.0
    %118 = vmatpush1.msra.mxu0 0.0
    %119 = vmatprep.subr.mxu0 0.0
    %120 = vmatpush1.msra.mxu0 0.0
    %121 = vmatprep.subr.mxu0 0.0
    %122 = vmatpush1.msra.mxu0 0.0
    %123 = vmatprep.subr.mxu0 0.0
    %124 = vmatpush1.msra.mxu0 0.0
    %125 = vmatprep.subr.mxu0 0.0
    %126 = vmatpush1.msra.mxu0 0.0
    %127 = vmatprep.subr.mxu0 0.0
    %128 = vmatpush1.msra.mxu0 0.0
    %129 = vmatprep.subr.mxu0 0.0
    %130 = vmatpush1.msra.mxu0 0.0
    %131 = vmatprep.subr.mxu0 0.0
    %132 = vmatpush1.msra.mxu0 0.0
    %133 = vmatprep.subr.mxu0 0.0
    %134 = vmatpush1.msra.mxu0 0.0
    %135 = vmatprep.subr.mxu0 0.0
    %136 = vmatpush1.msra.mxu0 0.0
    %137 = vmatprep.subr.mxu0 0.0
    %138 = vmatpush1.msra.mxu0 0.0
    %139 = vmatprep.subr.mxu0 0.0
    %140 = vmatpush1.msra.mxu0 0.0
    %141 = vmatprep.subr.mxu0 0.0
    %142 = vmatpush1.msra.mxu0 0.0
    %143 = vmatprep.subr.mxu0 0.0
    %144 = vmatpush1.msra.mxu0 0.0
    %145 = vmatprep.subr.mxu0 0.0
    %146 = vmatpush1.msra.mxu0 0.0
    %147 = vmatprep.subr.mxu0 0.0
    %148 = vmatpush1.msra.mxu0 0.0
    %149 = vmatprep.subr.mxu0 0.0
    %150 = vmatpush1.msra.mxu0 0.0
    %151 = vmatprep.subr.mxu0 0.0
    %152 = vmatpush1.msra.mxu0 0.0
    %153 = vmatprep.subr.mxu0 0.0
    %154 = vmatpush1.msra.mxu0 0.0
    %155 = vmatprep.subr.mxu0 0.0
    %156 = vmatpush1.msra.mxu0 0.0
    %157 = vmatprep.subr.mxu0 0.0
    %158 = vmatpush1.msra.mxu0 0.0
    %159 = vmatprep.subr.mxu0 0.0
    %160 = vmatpush1.msra.mxu0 0.0
    %161 = vmatprep.mubr.f32.mxu0 0.0
    %v162 = vand.u32 %v48, 4294901760
    %v163 = vsub.f32 %v48, %v162
    %v164 = vand.u32 %v163, 4294901760
    %v165 = vsub.f32 %v163, %v164
    %v166 = vand.u32 %v165, 4294901760
    %167 = vmatmul.mubr.f32.gmra.mrb[0].mxu0 %v166
    %v168 = vpop.f32.mrb[0].mxu0
    %v169 = vadd.f32 %v44, %v168
    %v170 = vpop.f32.mrb[0].mxu0
    %171 = vmatprep.mubr.f32.mxu0 0.0
    %v172 = vand.u32 %v51, 4294901760
    %v173 = vsub.f32 %v51, %v172
    %v174 = vand.u32 %v173, 4294901760
    %v175 = vsub.f32 %v173, %v174
    %v176 = vand.u32 %v175, 4294901760
    %177 = vmatmul.mubr.f32.gmra.mrb[0].mxu0 %v176
    %v178 = vpop.f32.mrb[0].mxu0
    %v179 = vadd.f32 %v44, %v178
    %v180 = vpop.f32.mrb[0].mxu0
    %181 = vmatprep.mubr.f32.mxu0 0.0
    %v182 = vand.u32 %v54, 4294901760
    %v183 = vsub.f32 %v54, %v182
    %v184 = vand.u32 %v183, 4294901760
    %v185 = vsub.f32 %v183, %v184
    %v186 = vand.u32 %v185, 4294901760
    %187 = vmatmul.mubr.f32.gmra.mrb[0].mxu0 %v186
    %v188 = vpop.f32.mrb[0].mxu0
    %v189 = vadd.f32 %v44, %v188
    %v190 = vpop.f32.mrb[0].mxu0
    %191 = vmatprep.mubr.f32.mxu0 0.0
    %v192 = vand.u32 %v57, 4294901760
    %v193 = vsub.f32 %v57, %v192
    %v194 = vand.u32 %v193, 4294901760
    %v195 = vsub.f32 %v193, %v194
    %v196 = vand.u32 %v195, 4294901760
    %197 = vmatmul.mubr.f32.gmra.mrb[0].mxu0 %v196
    %v198 = vpop.f32.mrb[0].mxu0
    %v199 = vadd.f32 %v44, %v198
    %v200 = vpop.f32.mrb[0].mxu0
    %201 = vmatprep.mubr.f32.mxu0 0.0
    %v202 = vand.u32 %v60, 4294901760
    %v203 = vsub.f32 %v60, %v202
    %v204 = vand.u32 %v203, 4294901760
    %v205 = vsub.f32 %v203, %v204
    %v206 = vand.u32 %v205, 4294901760
    %207 = vmatmul.mubr.f32.gmra.mrb[0].mxu0 %v206
    %v208 = vpop.f32.mrb[0].mxu0
    %v209 = vadd.f32 %v44, %v208
    %v210 = vpop.f32.mrb[0].mxu0
    %211 = vmatprep.mubr.f32.mxu0 0.0
    %v212 = vand.u32 %v63, 4294901760
    %v213 = vsub.f32 %v63, %v212
    %v214 = vand.u32 %v213, 4294901760
    %v215 = vsub.f32 %v213, %v214
    %v216 = vand.u32 %v215, 4294901760
    %217 = vmatmul.mubr.f32.gmra.mrb[0].mxu0 %v216
    %v218 = vpop.f32.mrb[0].mxu0
    %v219 = vadd.f32 %v44, %v218
    %v220 = vpop.f32.mrb[0].mxu0
    %221 = vmatprep.mubr.f32.mxu0 0.0
    %v222 = vand.u32 %v66, 4294901760
    %v223 = vsub.f32 %v66, %v222
    %v224 = vand.u32 %v223, 4294901760
    %v225 = vsub.f32 %v223, %v224
    %v226 = vand.u32 %v225, 4294901760
    %227 = vmatmul.mubr.f32.gmra.mrb[0].mxu0 %v226
    %v228 = vpop.f32.mrb[0].mxu0
    %v229 = vadd.f32 %v44, %v228
    %v230 = vpop.f32.mrb[0].mxu0
    %231 = vmatprep.mubr.f32.mxu0 0.0
    %v232 = vand.u32 %v69, 4294901760
    %v233 = vsub.f32 %v69, %v232
    %v234 = vand.u32 %v233, 4294901760
    %v235 = vsub.f32 %v233, %v234
    %v236 = vand.u32 %v235, 4294901760
    %237 = vmatmul.mubr.f32.gmra.mrb[0].mxu0 %v236
    %v238 = vpop.f32.mrb[0].mxu0
    %v239 = vadd.f32 %v44, %v238
    %v240 = vpop.f32.mrb[0].mxu0
    %241 = vmatprep.mubr.f32.mxu0 0.0
    %v242 = vand.u32 %v72, 4294901760
    %v243 = vsub.f32 %v72, %v242
    %v244 = vand.u32 %v243, 4294901760
    %v245 = vsub.f32 %v243, %v244
    %v246 = vand.u32 %v245, 4294901760
    %247 = vmatmul.mubr.f32.gmra.mrb[0].mxu0 %v246
    %v248 = vpop.f32.mrb[0].mxu0
    %v249 = vadd.f32 %v44, %v248
    %v250 = vpop.f32.mrb[0].mxu0
    %251 = vmatprep.mubr.f32.mxu0 0.0
    %v252 = vand.u32 %v75, 4294901760
    %v253 = vsub.f32 %v75, %v252
    %v254 = vand.u32 %v253, 4294901760
    %v255 = vsub.f32 %v253, %v254
    %v256 = vand.u32 %v255, 4294901760
    %257 = vmatmul.mubr.f32.gmra.mrb[0].mxu0 %v256
    %v258 = vpop.f32.mrb[0].mxu0
    %v259 = vadd.f32 %v44, %v258
    %v260 = vpop.f32.mrb[0].mxu0
    %261 = vmatprep.mubr.f32.mxu0 0.0
    %v262 = vand.u32 %v78, 4294901760
    %v263 = vsub.f32 %v78, %v262
    %v264 = vand.u32 %v263, 4294901760
    %v265 = vsub.f32 %v263, %v264
    %v266 = vand.u32 %v265, 4294901760
    %267 = vmatmul.mubr.f32.gmra.mrb[0].mxu0 %v266
    %v268 = vpop.f32.mrb[0].mxu0
    %v269 = vadd.f32 %v44, %v268
    %v270 = vpop.f32.mrb[0].mxu0
    %271 = vmatprep.mubr.f32.mxu0 0.0
    %v272 = vand.u32 %v81, 4294901760
    %v273 = vsub.f32 %v81, %v272
    %v274 = vand.u32 %v273, 4294901760
    %v275 = vsub.f32 %v273, %v274
    %v276 = vand.u32 %v275, 4294901760
    %277 = vmatmul.mubr.f32.gmra.mrb[0].mxu0 %v276
    %v278 = vpop.f32.mrb[0].mxu0
    %v279 = vadd.f32 %v44, %v278
    %v280 = vpop.f32.mrb[0].mxu0
    %281 = vmatprep.mubr.f32.mxu0 0.0
    %v282 = vand.u32 %v84, 4294901760
    %v283 = vsub.f32 %v84, %v282
    %v284 = vand.u32 %v283, 4294901760
    %v285 = vsub.f32 %v283, %v284
    %v286 = vand.u32 %v285, 4294901760
    %287 = vmatmul.mubr.f32.gmra.mrb[0].mxu0 %v286
    %v288 = vpop.f32.mrb[0].mxu0
    %v289 = vadd.f32 %v44, %v288
    %v290 = vpop.f32.mrb[0].mxu0
    %291 = vmatprep.mubr.f32.mxu0 0.0
    %v292 = vand.u32 %v87, 4294901760
    %v293 = vsub.f32 %v87, %v292
    %v294 = vand.u32 %v293, 4294901760
    %v295 = vsub.f32 %v293, %v294
    %v296 = vand.u32 %v295, 4294901760
    %297 = vmatmul.mubr.f32.gmra.mrb[0].mxu0 %v296
    %v298 = vpop.f32.mrb[0].mxu0
    %v299 = vadd.f32 %v44, %v298
    %v300 = vpop.f32.mrb[0].mxu0
    %301 = vmatprep.mubr.f32.mxu0 0.0
    %v302 = vand.u32 %v90, 4294901760
    %v303 = vsub.f32 %v90, %v302
    %v304 = vand.u32 %v303, 4294901760
    %v305 = vsub.f32 %v303, %v304
    %v306 = vand.u32 %v305, 4294901760
    %307 = vmatmul.mubr.f32.gmra.mrb[0].mxu0 %v306
    %v308 = vpop.f32.mrb[0].mxu0
    %v309 = vadd.f32 %v44, %v308
    %v310 = vpop.f32.mrb[0].mxu0
    %311 = vmatprep.mubr.f32.mxu0 0.0
    %v312 = vand.u32 %v93, 4294901760
    %v313 = vsub.f32 %v93, %v312
    %v314 = vand.u32 %v313, 4294901760
    %v315 = vsub.f32 %v313, %v314
    %v316 = vand.u32 %v315, 4294901760
    %317 = vmatmul.mubr.f32.gmra.mrb[0].mxu0 %v316
    %v318 = vpop.f32.mrb[0].mxu0
    %v319 = vadd.f32 %v44, %v318
    %v320 = vpop.f32.mrb[0].mxu0
    %321 = vdwg.mxu0
    %322 = vmatprep.subr.mxu0 0.0
    %v323 = vand.u32 %v37, 4294901760
    %v324 = vsub.f32 %v37, %v323
    %v325 = vand.u32 %v324, 4294901760
    %v326 = vsub.f32 %v324, %v325
    %v327 = vand.u32 %v326, 4294901760
    %328 = vmatpush1.msra.mxu0 %v327
    %329 = vmatprep.subr.mxu0 0.0
    %v330 = vand.u32 %v38, 4294901760
    %v331 = vsub.f32 %v38, %v330
    %v332 = vand.u32 %v331, 4294901760
    %v333 = vsub.f32 %v331, %v332
    %v334 = vand.u32 %v333, 4294901760
    %335 = vmatpush1.msra.mxu0 %v334
    %336 = vmatprep.subr.mxu0 0.0
    %337 = vmatpush1.msra.mxu0 0.0
    %338 = vmatprep.subr.mxu0 0.0
    %339 = vmatpush1.msra.mxu0 0.0
    %340 = vmatprep.subr.mxu0 0.0
    %341 = vmatpush1.msra.mxu0 0.0
    %342 = vmatprep.subr.mxu0 0.0
    %343 = vmatpush1.msra.mxu0 0.0
    %344 = vmatprep.subr.mxu0 0.0
    %345 = vmatpush1.msra.mxu0 0.0
    %346 = vmatprep.subr.mxu0 0.0
    %347 = vmatpush1.msra.mxu0 0.0
    %348 = vmatprep.subr.mxu0 0.0
    %349 = vmatpush1.msra.mxu0 0.0
    %350 = vmatprep.subr.mxu0 0.0
    %351 = vmatpush1.msra.mxu0 0.0
    %352 = vmatprep.subr.mxu0 0.0
    %353 = vmatpush1.msra.mxu0 0.0
    %354 = vmatprep.subr.mxu0 0.0
    %355 = vmatpush1.msra.mxu0 0.0
    %356 = vmatprep.subr.mxu0 0.0
    %357 = vmatpush1.msra.mxu0 0.0
    %358 = vmatprep.subr.mxu0 0.0
    %359 = vmatpush1.msra.mxu0 0.0
    %360 = vmatprep.subr.mxu0 0.0
    %361 = vmatpush1.msra.mxu0 0.0
    %362 = vmatprep.subr.mxu0 0.0
    %363 = vmatpush1.msra.mxu0 0.0
    %364 = vmatprep.subr.mxu0 0.0
    %365 = vmatpush1.msra.mxu0 0.0
    %366 = vmatprep.subr.mxu0 0.0
    %367 = vmatpush1.msra.mxu0 0.0
    %368 = vmatprep.subr.mxu0 0.0
    %369 = vmatpush1.msra.mxu0 0.0
    %370 = vmatprep.subr.mxu0 0.0
    %371 = vmatpush1.msra.mxu0 0.0
    %372 = vmatprep.subr.mxu0 0.0
    %373 = vmatpush1.msra.mxu0 0.0
    %374 = vmatprep.subr.mxu0 0.0
    %375 = vmatpush1.msra.mxu0 0.0
    %376 = vmatprep.subr.mxu0 0.0
    %377 = vmatpush1.msra.mxu0 0.0
    %378 = vmatprep.subr.mxu0 0.0
    %379 = vmatpush1.msra.mxu0 0.0
    %380 = vmatprep.subr.mxu0 0.0
    %381 = vmatpush1.msra.mxu0 0.0
    %382 = vmatprep.subr.mxu0 0.0
    %383 = vmatpush1.msra.mxu0 0.0
    %384 = vmatprep.subr.mxu0 0.0
    %385 = vmatpush1.msra.mxu0 0.0
    %386 = vmatprep.subr.mxu0 0.0
    %387 = vmatpush1.msra.mxu0 0.0
    %388 = vmatprep.subr.mxu0 0.0
    %389 = vmatpush1.msra.mxu0 0.0
    %390 = vmatprep.subr.mxu0 0.0
    %391 = vmatpush1.msra.mxu0 0.0
    %392 = vmatprep.subr.mxu0 0.0
    %393 = vmatpush1.msra.mxu0 0.0
    %394 = vmatprep.subr.mxu0 0.0
    %395 = vmatpush1.msra.mxu0 0.0
    %396 = vmatprep.mubr.f32.mxu0 0.0
    %v397 = vand.u32 %v48, 4294901760
    %398 = vmatmul.mubr.f32.gmra.mrb[0].mxu0 %v397
    %v399 = vpop.f32.mrb[0].mxu0
    %v400 = vadd.f32 %v169, %v399
    %v401 = vpop.f32.mrb[0].mxu0
    %402 = vmatprep.mubr.f32.mxu0 0.0
    %v403 = vand.u32 %v51, 4294901760
    %404 = vmatmul.mubr.f32.gmra.mrb[0].mxu0 %v403
    %v405 = vpop.f32.mrb[0].mxu0
    %v406 = vadd.f32 %v179, %v405
    %v407 = vpop.f32.mrb[0].mxu0
    %408 = vmatprep.mubr.f32.mxu0 0.0
    %v409 = vand.u32 %v54, 4294901760
    %410 = vmatmul.mubr.f32.gmra.mrb[0].mxu0 %v409
    %v411 = vpop.f32.mrb[0].mxu0
    %v412 = vadd.f32 %v189, %v411
    %v413 = vpop.f32.mrb[0].mxu0
    %414 = vmatprep.mubr.f32.mxu0 0.0
    %v415 = vand.u32 %v57, 4294901760
    %416 = vmatmul.mubr.f32.gmra.mrb[0].mxu0 %v415
    %v417 = vpop.f32.mrb[0].mxu0
    %v418 = vadd.f32 %v199, %v417
    %v419 = vpop.f32.mrb[0].mxu0
    %420 = vmatprep.mubr.f32.mxu0 0.0
    %v421 = vand.u32 %v60, 4294901760
    %422 = vmatmul.mubr.f32.gmra.mrb[0].mxu0 %v421
    %v423 = vpop.f32.mrb[0].mxu0
    %v424 = vadd.f32 %v209, %v423
    %v425 = vpop.f32.mrb[0].mxu0
    %426 = vmatprep.mubr.f32.mxu0 0.0
    %v427 = vand.u32 %v63, 4294901760
    %428 = vmatmul.mubr.f32.gmra.mrb[0].mxu0 %v427
    %v429 = vpop.f32.mrb[0].mxu0
    %v430 = vadd.f32 %v219, %v429
    %v431 = vpop.f32.mrb[0].mxu0
    %432 = vmatprep.mubr.f32.mxu0 0.0
    %v433 = vand.u32 %v66, 4294901760
    %434 = vmatmul.mubr.f32.gmra.mrb[0].mxu0 %v433
    %v435 = vpop.f32.mrb[0].mxu0
    %v436 = vadd.f32 %v229, %v435
    %v437 = vpop.f32.mrb[0].mxu0
    %438 = vmatprep.mubr.f32.mxu0 0.0
    %v439 = vand.u32 %v69, 4294901760
    %440 = vmatmul.mubr.f32.gmra.mrb[0].mxu0 %v439
    %v441 = vpop.f32.mrb[0].mxu0
    %v442 = vadd.f32 %v239, %v441
    %v443 = vpop.f32.mrb[0].mxu0
    %444 = vmatprep.mubr.f32.mxu0 0.0
    %v445 = vand.u32 %v72, 4294901760
    %446 = vmatmul.mubr.f32.gmra.mrb[0].mxu0 %v445
    %v447 = vpop.f32.mrb[0].mxu0
    %v448 = vadd.f32 %v249, %v447
    %v449 = vpop.f32.mrb[0].mxu0
    %450 = vmatprep.mubr.f32.mxu0 0.0
    %v451 = vand.u32 %v75, 4294901760
    %452 = vmatmul.mubr.f32.gmra.mrb[0].mxu0 %v451
    %v453 = vpop.f32.mrb[0].mxu0
    %v454 = vadd.f32 %v259, %v453
    %v455 = vpop.f32.mrb[0].mxu0
    %456 = vmatprep.mubr.f32.mxu0 0.0
    %v457 = vand.u32 %v78, 4294901760
    %458 = vmatmul.mubr.f32.gmra.mrb[0].mxu0 %v457
    %v459 = vpop.f32.mrb[0].mxu0
    %v460 = vadd.f32 %v269, %v459
    %v461 = vpop.f32.mrb[0].mxu0
    %462 = vmatprep.mubr.f32.mxu0 0.0
    %v463 = vand.u32 %v81, 4294901760
    %464 = vmatmul.mubr.f32.gmra.mrb[0].mxu0 %v463
    %v465 = vpop.f32.mrb[0].mxu0
    %v466 = vadd.f32 %v279, %v465
    %v467 = vpop.f32.mrb[0].mxu0
    %468 = vmatprep.mubr.f32.mxu0 0.0
    %v469 = vand.u32 %v84, 4294901760
    %470 = vmatmul.mubr.f32.gmra.mrb[0].mxu0 %v469
    %v471 = vpop.f32.mrb[0].mxu0
    %v472 = vadd.f32 %v289, %v471
    %v473 = vpop.f32.mrb[0].mxu0
    %474 = vmatprep.mubr.f32.mxu0 0.0
    %v475 = vand.u32 %v87, 4294901760
    %476 = vmatmul.mubr.f32.gmra.mrb[0].mxu0 %v475
    %v477 = vpop.f32.mrb[0].mxu0
    %v478 = vadd.f32 %v299, %v477
    %v479 = vpop.f32.mrb[0].mxu0
    %480 = vmatprep.mubr.f32.mxu0 0.0
    %v481 = vand.u32 %v90, 4294901760
    %482 = vmatmul.mubr.f32.gmra.mrb[0].mxu0 %v481
    %v483 = vpop.f32.mrb[0].mxu0
    %v484 = vadd.f32 %v309, %v483
    %v485 = vpop.f32.mrb[0].mxu0
    %486 = vmatprep.mubr.f32.mxu0 0.0
    %v487 = vand.u32 %v93, 4294901760
    %488 = vmatmul.mubr.f32.gmra.mrb[0].mxu0 %v487
    %v489 = vpop.f32.mrb[0].mxu0
    %v490 = vadd.f32 %v319, %v489
    %v491 = vpop.f32.mrb[0].mxu0
    %492 = vdwg.mxu0
    %493 = vmatprep.subr.mxu0 0.0
    %v494 = vand.u32 %v37, 4294901760
    %v495 = vsub.f32 %v37, %v494
    %496 = vmatpush1.msra.mxu0 %v495
    %497 = vmatprep.subr.mxu0 0.0
    %v498 = vand.u32 %v38, 4294901760
    %v499 = vsub.f32 %v38, %v498
    %500 = vmatpush1.msra.mxu0 %v499
    %501 = vmatprep.subr.mxu0 0.0
    %502 = vmatpush1.msra.mxu0 0.0
    %503 = vmatprep.subr.mxu0 0.0
    %504 = vmatpush1.msra.mxu0 0.0
    %505 = vmatprep.subr.mxu0 0.0
    %506 = vmatpush1.msra.mxu0 0.0
    %507 = vmatprep.subr.mxu0 0.0
    %508 = vmatpush1.msra.mxu0 0.0
    %509 = vmatprep.subr.mxu0 0.0
    %510 = vmatpush1.msra.mxu0 0.0
    %511 = vmatprep.subr.mxu0 0.0
    %512 = vmatpush1.msra.mxu0 0.0
    %513 = vmatprep.subr.mxu0 0.0
    %514 = vmatpush1.msra.mxu0 0.0
    %515 = vmatprep.subr.mxu0 0.0
    %516 = vmatpush1.msra.mxu0 0.0
    %517 = vmatprep.subr.mxu0 0.0
    %518 = vmatpush1.msra.mxu0 0.0
    %519 = vmatprep.subr.mxu0 0.0
    %520 = vmatpush1.msra.mxu0 0.0
    %521 = vmatprep.subr.mxu0 0.0
    %522 = vmatpush1.msra.mxu0 0.0
    %523 = vmatprep.subr.mxu0 0.0
    %524 = vmatpush1.msra.mxu0 0.0
    %525 = vmatprep.subr.mxu0 0.0
    %526 = vmatpush1.msra.mxu0 0.0
    %527 = vmatprep.subr.mxu0 0.0
    %528 = vmatpush1.msra.mxu0 0.0
    %529 = vmatprep.subr.mxu0 0.0
    %530 = vmatpush1.msra.mxu0 0.0
    %531 = vmatprep.subr.mxu0 0.0
    %532 = vmatpush1.msra.mxu0 0.0
    %533 = vmatprep.subr.mxu0 0.0
    %534 = vmatpush1.msra.mxu0 0.0
    %535 = vmatprep.subr.mxu0 0.0
    %536 = vmatpush1.msra.mxu0 0.0
    %537 = vmatprep.subr.mxu0 0.0
    %538 = vmatpush1.msra.mxu0 0.0
    %539 = vmatprep.subr.mxu0 0.0
    %540 = vmatpush1.msra.mxu0 0.0
    %541 = vmatprep.subr.mxu0 0.0
    %542 = vmatpush1.msra.mxu0 0.0
    %543 = vmatprep.subr.mxu0 0.0
    %544 = vmatpush1.msra.mxu0 0.0
    %545 = vmatprep.subr.mxu0 0.0
    %546 = vmatpush1.msra.mxu0 0.0
    %547 = vmatprep.subr.mxu0 0.0
    %548 = vmatpush1.msra.mxu0 0.0
    %549 = vmatprep.subr.mxu0 0.0
    %550 = vmatpush1.msra.mxu0 0.0
    %551 = vmatprep.subr.mxu0 0.0
    %552 = vmatpush1.msra.mxu0 0.0
    %553 = vmatprep.subr.mxu0 0.0
    %554 = vmatpush1.msra.mxu0 0.0
    %555 = vmatprep.subr.mxu0 0.0
    %556 = vmatpush1.msra.mxu0 0.0
    %557 = vmatprep.subr.mxu0 0.0
    %558 = vmatpush1.msra.mxu0 0.0
    %559 = vmatprep.subr.mxu0 0.0
    %560 = vmatpush1.msra.mxu0 0.0
    %561 = vmatprep.mubr.f32.mxu0 0.0
    %v562 = vand.u32 %v48, 4294901760
    %v563 = vsub.f32 %v48, %v562
    %564 = vmatmul.mubr.f32.gmra.mrb[0].mxu0 %v563
    %v565 = vpop.f32.mrb[0].mxu0
    %v566 = vadd.f32 %v400, %v565
    %v567 = vpop.f32.mrb[0].mxu0
    %568 = vmatprep.mubr.f32.mxu0 0.0
    %v569 = vand.u32 %v51, 4294901760
    %v570 = vsub.f32 %v51, %v569
    %571 = vmatmul.mubr.f32.gmra.mrb[0].mxu0 %v570
    %v572 = vpop.f32.mrb[0].mxu0
    %v573 = vadd.f32 %v406, %v572
    %v574 = vpop.f32.mrb[0].mxu0
    %575 = vmatprep.mubr.f32.mxu0 0.0
    %v576 = vand.u32 %v54, 4294901760
    %v577 = vsub.f32 %v54, %v576
    %578 = vmatmul.mubr.f32.gmra.mrb[0].mxu0 %v577
    %v579 = vpop.f32.mrb[0].mxu0
    %v580 = vadd.f32 %v412, %v579
    %v581 = vpop.f32.mrb[0].mxu0
    %582 = vmatprep.mubr.f32.mxu0 0.0
    %v583 = vand.u32 %v57, 4294901760
    %v584 = vsub.f32 %v57, %v583
    %585 = vmatmul.mubr.f32.gmra.mrb[0].mxu0 %v584
    %v586 = vpop.f32.mrb[0].mxu0
    %v587 = vadd.f32 %v418, %v586
    %v588 = vpop.f32.mrb[0].mxu0
    %589 = vmatprep.mubr.f32.mxu0 0.0
    %v590 = vand.u32 %v60, 4294901760
    %v591 = vsub.f32 %v60, %v590
    %592 = vmatmul.mubr.f32.gmra.mrb[0].mxu0 %v591
    %v593 = vpop.f32.mrb[0].mxu0
    %v594 = vadd.f32 %v424, %v593
    %v595 = vpop.f32.mrb[0].mxu0
    %596 = vmatprep.mubr.f32.mxu0 0.0
    %v597 = vand.u32 %v63, 4294901760
    %v598 = vsub.f32 %v63, %v597
    %599 = vmatmul.mubr.f32.gmra.mrb[0].mxu0 %v598
    %v600 = vpop.f32.mrb[0].mxu0
    %v601 = vadd.f32 %v430, %v600
    %v602 = vpop.f32.mrb[0].mxu0
    %603 = vmatprep.mubr.f32.mxu0 0.0
    %v604 = vand.u32 %v66, 4294901760
    %v605 = vsub.f32 %v66, %v604
    %606 = vmatmul.mubr.f32.gmra.mrb[0].mxu0 %v605
    %v607 = vpop.f32.mrb[0].mxu0
    %v608 = vadd.f32 %v436, %v607
    %v609 = vpop.f32.mrb[0].mxu0
    %610 = vmatprep.mubr.f32.mxu0 0.0
    %v611 = vand.u32 %v69, 4294901760
    %v612 = vsub.f32 %v69, %v611
    %613 = vmatmul.mubr.f32.gmra.mrb[0].mxu0 %v612
    %v614 = vpop.f32.mrb[0].mxu0
    %v615 = vadd.f32 %v442, %v614
    %v616 = vpop.f32.mrb[0].mxu0
    %617 = vmatprep.mubr.f32.mxu0 0.0
    %v618 = vand.u32 %v72, 4294901760
    %v619 = vsub.f32 %v72, %v618
    %620 = vmatmul.mubr.f32.gmra.mrb[0].mxu0 %v619
    %v621 = vpop.f32.mrb[0].mxu0
    %v622 = vadd.f32 %v448, %v621
    %v623 = vpop.f32.mrb[0].mxu0
    %624 = vmatprep.mubr.f32.mxu0 0.0
    %v625 = vand.u32 %v75, 4294901760
    %v626 = vsub.f32 %v75, %v625
    %627 = vmatmul.mubr.f32.gmra.mrb[0].mxu0 %v626
    %v628 = vpop.f32.mrb[0].mxu0
    %v629 = vadd.f32 %v454, %v628
    %v630 = vpop.f32.mrb[0].mxu0
    %631 = vmatprep.mubr.f32.mxu0 0.0
    %v632 = vand.u32 %v78, 4294901760
    %v633 = vsub.f32 %v78, %v632
    %634 = vmatmul.mubr.f32.gmra.mrb[0].mxu0 %v633
    %v635 = vpop.f32.mrb[0].mxu0
    %v636 = vadd.f32 %v460, %v635
    %v637 = vpop.f32.mrb[0].mxu0
    %638 = vmatprep.mubr.f32.mxu0 0.0
    %v639 = vand.u32 %v81, 4294901760
    %v640 = vsub.f32 %v81, %v639
    %641 = vmatmul.mubr.f32.gmra.mrb[0].mxu0 %v640
    %v642 = vpop.f32.mrb[0].mxu0
    %v643 = vadd.f32 %v466, %v642
    %v644 = vpop.f32.mrb[0].mxu0
    %645 = vmatprep.mubr.f32.mxu0 0.0
    %v646 = vand.u32 %v84, 4294901760
    %v647 = vsub.f32 %v84, %v646
    %648 = vmatmul.mubr.f32.gmra.mrb[0].mxu0 %v647
    %v649 = vpop.f32.mrb[0].mxu0
    %v650 = vadd.f32 %v472, %v649
    %v651 = vpop.f32.mrb[0].mxu0
    %652 = vmatprep.mubr.f32.mxu0 0.0
    %v653 = vand.u32 %v87, 4294901760
    %v654 = vsub.f32 %v87, %v653
    %655 = vmatmul.mubr.f32.gmra.mrb[0].mxu0 %v654
    %v656 = vpop.f32.mrb[0].mxu0
    %v657 = vadd.f32 %v478, %v656
    %v658 = vpop.f32.mrb[0].mxu0
    %659 = vmatprep.mubr.f32.mxu0 0.0
    %v660 = vand.u32 %v90, 4294901760
    %v661 = vsub.f32 %v90, %v660
    %662 = vmatmul.mubr.f32.gmra.mrb[0].mxu0 %v661
    %v663 = vpop.f32.mrb[0].mxu0
    %v664 = vadd.f32 %v484, %v663
    %v665 = vpop.f32.mrb[0].mxu0
    %666 = vmatprep.mubr.f32.mxu0 0.0
    %v667 = vand.u32 %v93, 4294901760
    %v668 = vsub.f32 %v93, %v667
    %669 = vmatmul.mubr.f32.gmra.mrb[0].mxu0 %v668
    %v670 = vpop.f32.mrb[0].mxu0
    %v671 = vadd.f32 %v490, %v670
    %v672 = vpop.f32.mrb[0].mxu0
    %673 = vdwg.mxu0
    %674 = vmatprep.subr.mxu0 0.0
    %v675 = vand.u32 %v37, 4294901760
    %676 = vmatpush1.msra.mxu0 %v675
    %677 = vmatprep.subr.mxu0 0.0
    %v678 = vand.u32 %v38, 4294901760
    %679 = vmatpush1.msra.mxu0 %v678
    %680 = vmatprep.subr.mxu0 0.0
    %681 = vmatpush1.msra.mxu0 0.0
    %682 = vmatprep.subr.mxu0 0.0
    %683 = vmatpush1.msra.mxu0 0.0
    %684 = vmatprep.subr.mxu0 0.0
    %685 = vmatpush1.msra.mxu0 0.0
    %686 = vmatprep.subr.mxu0 0.0
    %687 = vmatpush1.msra.mxu0 0.0
    %688 = vmatprep.subr.mxu0 0.0
    %689 = vmatpush1.msra.mxu0 0.0
    %690 = vmatprep.subr.mxu0 0.0
    %691 = vmatpush1.msra.mxu0 0.0
    %692 = vmatprep.subr.mxu0 0.0
    %693 = vmatpush1.msra.mxu0 0.0
    %694 = vmatprep.subr.mxu0 0.0
    %695 = vmatpush1.msra.mxu0 0.0
    %696 = vmatprep.subr.mxu0 0.0
    %697 = vmatpush1.msra.mxu0 0.0
    %698 = vmatprep.subr.mxu0 0.0
    %699 = vmatpush1.msra.mxu0 0.0
    %700 = vmatprep.subr.mxu0 0.0
    %701 = vmatpush1.msra.mxu0 0.0
    %702 = vmatprep.subr.mxu0 0.0
    %703 = vmatpush1.msra.mxu0 0.0
    %704 = vmatprep.subr.mxu0 0.0
    %705 = vmatpush1.msra.mxu0 0.0
    %706 = vmatprep.subr.mxu0 0.0
    %707 = vmatpush1.msra.mxu0 0.0
    %708 = vmatprep.subr.mxu0 0.0
    %709 = vmatpush1.msra.mxu0 0.0
    %710 = vmatprep.subr.mxu0 0.0
    %711 = vmatpush1.msra.mxu0 0.0
    %712 = vmatprep.subr.mxu0 0.0
    %713 = vmatpush1.msra.mxu0 0.0
    %714 = vmatprep.subr.mxu0 0.0
    %715 = vmatpush1.msra.mxu0 0.0
    %716 = vmatprep.subr.mxu0 0.0
    %717 = vmatpush1.msra.mxu0 0.0
    %718 = vmatprep.subr.mxu0 0.0
    %719 = vmatpush1.msra.mxu0 0.0
    %720 = vmatprep.subr.mxu0 0.0
    %721 = vmatpush1.msra.mxu0 0.0
    %722 = vmatprep.subr.mxu0 0.0
    %723 = vmatpush1.msra.mxu0 0.0
    %724 = vmatprep.subr.mxu0 0.0
    %725 = vmatpush1.msra.mxu0 0.0
    %726 = vmatprep.subr.mxu0 0.0
    %727 = vmatpush1.msra.mxu0 0.0
    %728 = vmatprep.subr.mxu0 0.0
    %729 = vmatpush1.msra.mxu0 0.0
    %730 = vmatprep.subr.mxu0 0.0
    %731 = vmatpush1.msra.mxu0 0.0
    %732 = vmatprep.subr.mxu0 0.0
    %733 = vmatpush1.msra.mxu0 0.0
    %734 = vmatprep.subr.mxu0 0.0
    %735 = vmatpush1.msra.mxu0 0.0
    %736 = vmatprep.subr.mxu0 0.0
    %737 = vmatpush1.msra.mxu0 0.0
    %738 = vmatprep.subr.mxu0 0.0
    %739 = vmatpush1.msra.mxu0 0.0
    %740 = vmatprep.mubr.f32.mxu0 0.0
    %v741 = vand.u32 %v48, 4294901760
    %v742 = vsub.f32 %v48, %v741
    %v743 = vand.u32 %v742, 4294901760
    %744 = vmatmul.mubr.f32.gmra.mrb[0].mxu0 %v743
    %v745 = vpop.f32.mrb[0].mxu0
    %v746 = vadd.f32 %v566, %v745
    %v747 = vpop.f32.mrb[0].mxu0
    %748 = vmatprep.mubr.f32.mxu0 0.0
    %v749 = vand.u32 %v51, 4294901760
    %v750 = vsub.f32 %v51, %v749
    %v751 = vand.u32 %v750, 4294901760
    %752 = vmatmul.mubr.f32.gmra.mrb[0].mxu0 %v751
    %v753 = vpop.f32.mrb[0].mxu0
    %v754 = vadd.f32 %v573, %v753
    %v755 = vpop.f32.mrb[0].mxu0
    %756 = vmatprep.mubr.f32.mxu0 0.0
    %v757 = vand.u32 %v54, 4294901760
    %v758 = vsub.f32 %v54, %v757
    %v759 = vand.u32 %v758, 4294901760
    %760 = vmatmul.mubr.f32.gmra.mrb[0].mxu0 %v759
    %v761 = vpop.f32.mrb[0].mxu0
    %v762 = vadd.f32 %v580, %v761
    %v763 = vpop.f32.mrb[0].mxu0
    %764 = vmatprep.mubr.f32.mxu0 0.0
    %v765 = vand.u32 %v57, 4294901760
    %v766 = vsub.f32 %v57, %v765
    %v767 = vand.u32 %v766, 4294901760
    %768 = vmatmul.mubr.f32.gmra.mrb[0].mxu0 %v767
    %v769 = vpop.f32.mrb[0].mxu0
    %v770 = vadd.f32 %v587, %v769
    %v771 = vpop.f32.mrb[0].mxu0
    %772 = vmatprep.mubr.f32.mxu0 0.0
    %v773 = vand.u32 %v60, 4294901760
    %v774 = vsub.f32 %v60, %v773
    %v775 = vand.u32 %v774, 4294901760
    %776 = vmatmul.mubr.f32.gmra.mrb[0].mxu0 %v775
    %v777 = vpop.f32.mrb[0].mxu0
    %v778 = vadd.f32 %v594, %v777
    %v779 = vpop.f32.mrb[0].mxu0
    %780 = vmatprep.mubr.f32.mxu0 0.0
    %v781 = vand.u32 %v63, 4294901760
    %v782 = vsub.f32 %v63, %v781
    %v783 = vand.u32 %v782, 4294901760
    %784 = vmatmul.mubr.f32.gmra.mrb[0].mxu0 %v783
    %v785 = vpop.f32.mrb[0].mxu0
    %v786 = vadd.f32 %v601, %v785
    %v787 = vpop.f32.mrb[0].mxu0
    %788 = vmatprep.mubr.f32.mxu0 0.0
    %v789 = vand.u32 %v66, 4294901760
    %v790 = vsub.f32 %v66, %v789
    %v791 = vand.u32 %v790, 4294901760
    %792 = vmatmul.mubr.f32.gmra.mrb[0].mxu0 %v791
    %v793 = vpop.f32.mrb[0].mxu0
    %v794 = vadd.f32 %v608, %v793
    %v795 = vpop.f32.mrb[0].mxu0
    %796 = vmatprep.mubr.f32.mxu0 0.0
    %v797 = vand.u32 %v69, 4294901760
    %v798 = vsub.f32 %v69, %v797
    %v799 = vand.u32 %v798, 4294901760
    %800 = vmatmul.mubr.f32.gmra.mrb[0].mxu0 %v799
    %v801 = vpop.f32.mrb[0].mxu0
    %v802 = vadd.f32 %v615, %v801
    %v803 = vpop.f32.mrb[0].mxu0
    %804 = vmatprep.mubr.f32.mxu0 0.0
    %v805 = vand.u32 %v72, 4294901760
    %v806 = vsub.f32 %v72, %v805
    %v807 = vand.u32 %v806, 4294901760
    %808 = vmatmul.mubr.f32.gmra.mrb[0].mxu0 %v807
    %v809 = vpop.f32.mrb[0].mxu0
    %v810 = vadd.f32 %v622, %v809
    %v811 = vpop.f32.mrb[0].mxu0
    %812 = vmatprep.mubr.f32.mxu0 0.0
    %v813 = vand.u32 %v75, 4294901760
    %v814 = vsub.f32 %v75, %v813
    %v815 = vand.u32 %v814, 4294901760
    %816 = vmatmul.mubr.f32.gmra.mrb[0].mxu0 %v815
    %v817 = vpop.f32.mrb[0].mxu0
    %v818 = vadd.f32 %v629, %v817
    %v819 = vpop.f32.mrb[0].mxu0
    %820 = vmatprep.mubr.f32.mxu0 0.0
    %v821 = vand.u32 %v78, 4294901760
    %v822 = vsub.f32 %v78, %v821
    %v823 = vand.u32 %v822, 4294901760
    %824 = vmatmul.mubr.f32.gmra.mrb[0].mxu0 %v823
    %v825 = vpop.f32.mrb[0].mxu0
    %v826 = vadd.f32 %v636, %v825
    %v827 = vpop.f32.mrb[0].mxu0
    %828 = vmatprep.mubr.f32.mxu0 0.0
    %v829 = vand.u32 %v81, 4294901760
    %v830 = vsub.f32 %v81, %v829
    %v831 = vand.u32 %v830, 4294901760
    %832 = vmatmul.mubr.f32.gmra.mrb[0].mxu0 %v831
    %v833 = vpop.f32.mrb[0].mxu0
    %v834 = vadd.f32 %v643, %v833
    %v835 = vpop.f32.mrb[0].mxu0
    %836 = vmatprep.mubr.f32.mxu0 0.0
    %v837 = vand.u32 %v84, 4294901760
    %v838 = vsub.f32 %v84, %v837
    %v839 = vand.u32 %v838, 4294901760
    %840 = vmatmul.mubr.f32.gmra.mrb[0].mxu0 %v839
    %v841 = vpop.f32.mrb[0].mxu0
    %v842 = vadd.f32 %v650, %v841
    %v843 = vpop.f32.mrb[0].mxu0
    %844 = vmatprep.mubr.f32.mxu0 0.0
    %v845 = vand.u32 %v87, 4294901760
    %v846 = vsub.f32 %v87, %v845
    %v847 = vand.u32 %v846, 4294901760
    %848 = vmatmul.mubr.f32.gmra.mrb[0].mxu0 %v847
    %v849 = vpop.f32.mrb[0].mxu0
    %v850 = vadd.f32 %v657, %v849
    %v851 = vpop.f32.mrb[0].mxu0
    %852 = vmatprep.mubr.f32.mxu0 0.0
    %v853 = vand.u32 %v90, 4294901760
    %v854 = vsub.f32 %v90, %v853
    %v855 = vand.u32 %v854, 4294901760
    %856 = vmatmul.mubr.f32.gmra.mrb[0].mxu0 %v855
    %v857 = vpop.f32.mrb[0].mxu0
    %v858 = vadd.f32 %v664, %v857
    %v859 = vpop.f32.mrb[0].mxu0
    %860 = vmatprep.mubr.f32.mxu0 0.0
    %v861 = vand.u32 %v93, 4294901760
    %v862 = vsub.f32 %v93, %v861
    %v863 = vand.u32 %v862, 4294901760
    %864 = vmatmul.mubr.f32.gmra.mrb[0].mxu0 %v863
    %v865 = vpop.f32.mrb[0].mxu0
    %v866 = vadd.f32 %v671, %v865
    %v867 = vpop.f32.mrb[0].mxu0
    %868 = vdwg.mxu0
    %869 = vmatprep.subr.mxu0 0.0
    %v870 = vand.u32 %v37, 4294901760
    %v871 = vsub.f32 %v37, %v870
    %v872 = vand.u32 %v871, 4294901760
    %873 = vmatpush1.msra.mxu0 %v872
    %874 = vmatprep.subr.mxu0 0.0
    %v875 = vand.u32 %v38, 4294901760
    %v876 = vsub.f32 %v38, %v875
    %v877 = vand.u32 %v876, 4294901760
    %878 = vmatpush1.msra.mxu0 %v877
    %879 = vmatprep.subr.mxu0 0.0
    %880 = vmatpush1.msra.mxu0 0.0
    %881 = vmatprep.subr.mxu0 0.0
    %882 = vmatpush1.msra.mxu0 0.0
    %883 = vmatprep.subr.mxu0 0.0
    %884 = vmatpush1.msra.mxu0 0.0
    %885 = vmatprep.subr.mxu0 0.0
    %886 = vmatpush1.msra.mxu0 0.0
    %887 = vmatprep.subr.mxu0 0.0
    %888 = vmatpush1.msra.mxu0 0.0
    %889 = vmatprep.subr.mxu0 0.0
    %890 = vmatpush1.msra.mxu0 0.0
    %891 = vmatprep.subr.mxu0 0.0
    %892 = vmatpush1.msra.mxu0 0.0
    %893 = vmatprep.subr.mxu0 0.0
    %894 = vmatpush1.msra.mxu0 0.0
    %895 = vmatprep.subr.mxu0 0.0
    %896 = vmatpush1.msra.mxu0 0.0
    %897 = vmatprep.subr.mxu0 0.0
    %898 = vmatpush1.msra.mxu0 0.0
    %899 = vmatprep.subr.mxu0 0.0
    %900 = vmatpush1.msra.mxu0 0.0
    %901 = vmatprep.subr.mxu0 0.0
    %902 = vmatpush1.msra.mxu0 0.0
    %903 = vmatprep.subr.mxu0 0.0
    %904 = vmatpush1.msra.mxu0 0.0
    %905 = vmatprep.subr.mxu0 0.0
    %906 = vmatpush1.msra.mxu0 0.0
    %907 = vmatprep.subr.mxu0 0.0
    %908 = vmatpush1.msra.mxu0 0.0
    %909 = vmatprep.subr.mxu0 0.0
    %910 = vmatpush1.msra.mxu0 0.0
    %911 = vmatprep.subr.mxu0 0.0
    %912 = vmatpush1.msra.mxu0 0.0
    %913 = vmatprep.subr.mxu0 0.0
    %914 = vmatpush1.msra.mxu0 0.0
    %915 = vmatprep.subr.mxu0 0.0
    %916 = vmatpush1.msra.mxu0 0.0
    %917 = vmatprep.subr.mxu0 0.0
    %918 = vmatpush1.msra.mxu0 0.0
    %919 = vmatprep.subr.mxu0 0.0
    %920 = vmatpush1.msra.mxu0 0.0
    %921 = vmatprep.subr.mxu0 0.0
    %922 = vmatpush1.msra.mxu0 0.0
    %923 = vmatprep.subr.mxu0 0.0
    %924 = vmatpush1.msra.mxu0 0.0
    %925 = vmatprep.subr.mxu0 0.0
    %926 = vmatpush1.msra.mxu0 0.0
    %927 = vmatprep.subr.mxu0 0.0
    %928 = vmatpush1.msra.mxu0 0.0
    %929 = vmatprep.subr.mxu0 0.0
    %930 = vmatpush1.msra.mxu0 0.0
    %931 = vmatprep.subr.mxu0 0.0
    %932 = vmatpush1.msra.mxu0 0.0
    %933 = vmatprep.subr.mxu0 0.0
    %934 = vmatpush1.msra.mxu0 0.0
    %935 = vmatprep.subr.mxu0 0.0
    %936 = vmatpush1.msra.mxu0 0.0
    %937 = vmatprep.subr.mxu0 0.0
    %938 = vmatpush1.msra.mxu0 0.0
    %939 = vmatprep.mubr.f32.mxu0 0.0
    %v940 = vand.u32 %v48, 4294901760
    %941 = vmatmul.mubr.f32.gmra.mrb[0].mxu0 %v940
    %v942 = vpop.f32.mrb[0].mxu0
    %v943 = vadd.f32 %v746, %v942
    %v944 = vpop.f32.mrb[0].mxu0
    %945 = vmatprep.mubr.f32.mxu0 0.0
    %v946 = vand.u32 %v51, 4294901760
    %947 = vmatmul.mubr.f32.gmra.mrb[0].mxu0 %v946
    %v948 = vpop.f32.mrb[0].mxu0
    %v949 = vadd.f32 %v754, %v948
    %v950 = vpop.f32.mrb[0].mxu0
    %951 = vmatprep.mubr.f32.mxu0 0.0
    %v952 = vand.u32 %v54, 4294901760
    %953 = vmatmul.mubr.f32.gmra.mrb[0].mxu0 %v952
    %v954 = vpop.f32.mrb[0].mxu0
    %v955 = vadd.f32 %v762, %v954
    %v956 = vpop.f32.mrb[0].mxu0
    %957 = vmatprep.mubr.f32.mxu0 0.0
    %v958 = vand.u32 %v57, 4294901760
    %959 = vmatmul.mubr.f32.gmra.mrb[0].mxu0 %v958
    %v960 = vpop.f32.mrb[0].mxu0
    %v961 = vadd.f32 %v770, %v960
    %v962 = vpop.f32.mrb[0].mxu0
    %963 = vmatprep.mubr.f32.mxu0 0.0
    %v964 = vand.u32 %v60, 4294901760
    %965 = vmatmul.mubr.f32.gmra.mrb[0].mxu0 %v964
    %v966 = vpop.f32.mrb[0].mxu0
    %v967 = vadd.f32 %v778, %v966
    %v968 = vpop.f32.mrb[0].mxu0
    %969 = vmatprep.mubr.f32.mxu0 0.0
    %v970 = vand.u32 %v63, 4294901760
    %971 = vmatmul.mubr.f32.gmra.mrb[0].mxu0 %v970
    %v972 = vpop.f32.mrb[0].mxu0
    %v973 = vadd.f32 %v786, %v972
    %v974 = vpop.f32.mrb[0].mxu0
    %975 = vmatprep.mubr.f32.mxu0 0.0
    %v976 = vand.u32 %v66, 4294901760
    %977 = vmatmul.mubr.f32.gmra.mrb[0].mxu0 %v976
    %v978 = vpop.f32.mrb[0].mxu0
    %v979 = vadd.f32 %v794, %v978
    %v980 = vpop.f32.mrb[0].mxu0
    %981 = vmatprep.mubr.f32.mxu0 0.0
    %v982 = vand.u32 %v69, 4294901760
    %983 = vmatmul.mubr.f32.gmra.mrb[0].mxu0 %v982
    %v984 = vpop.f32.mrb[0].mxu0
    %v985 = vadd.f32 %v802, %v984
    %v986 = vpop.f32.mrb[0].mxu0
    %987 = vmatprep.mubr.f32.mxu0 0.0
    %v988 = vand.u32 %v72, 4294901760
    %989 = vmatmul.mubr.f32.gmra.mrb[0].mxu0 %v988
    %v990 = vpop.f32.mrb[0].mxu0
    %v991 = vadd.f32 %v810, %v990
    %v992 = vpop.f32.mrb[0].mxu0
    %993 = vmatprep.mubr.f32.mxu0 0.0
    %v994 = vand.u32 %v75, 4294901760
    %995 = vmatmul.mubr.f32.gmra.mrb[0].mxu0 %v994
    %v996 = vpop.f32.mrb[0].mxu0
    %v997 = vadd.f32 %v818, %v996
    %v998 = vpop.f32.mrb[0].mxu0
    %999 = vmatprep.mubr.f32.mxu0 0.0
    %v1000 = vand.u32 %v78, 4294901760
    %1001 = vmatmul.mubr.f32.gmra.mrb[0].mxu0 %v1000
    %v1002 = vpop.f32.mrb[0].mxu0
    %v1003 = vadd.f32 %v826, %v1002
    %v1004 = vpop.f32.mrb[0].mxu0
    %1005 = vmatprep.mubr.f32.mxu0 0.0
    %v1006 = vand.u32 %v81, 4294901760
    %1007 = vmatmul.mubr.f32.gmra.mrb[0].mxu0 %v1006
    %v1008 = vpop.f32.mrb[0].mxu0
    %v1009 = vadd.f32 %v834, %v1008
    %v1010 = vpop.f32.mrb[0].mxu0
    %1011 = vmatprep.mubr.f32.mxu0 0.0
    %v1012 = vand.u32 %v84, 4294901760
    %1013 = vmatmul.mubr.f32.gmra.mrb[0].mxu0 %v1012
    %v1014 = vpop.f32.mrb[0].mxu0
    %v1015 = vadd.f32 %v842, %v1014
    %v1016 = vpop.f32.mrb[0].mxu0
    %1017 = vmatprep.mubr.f32.mxu0 0.0
    %v1018 = vand.u32 %v87, 4294901760
    %1019 = vmatmul.mubr.f32.gmra.mrb[0].mxu0 %v1018
    %v1020 = vpop.f32.mrb[0].mxu0
    %v1021 = vadd.f32 %v850, %v1020
    %v1022 = vpop.f32.mrb[0].mxu0
    %1023 = vmatprep.mubr.f32.mxu0 0.0
    %v1024 = vand.u32 %v90, 4294901760
    %1025 = vmatmul.mubr.f32.gmra.mrb[0].mxu0 %v1024
    %v1026 = vpop.f32.mrb[0].mxu0
    %v1027 = vadd.f32 %v858, %v1026
    %v1028 = vpop.f32.mrb[0].mxu0
    %1029 = vmatprep.mubr.f32.mxu0 0.0
    %v1030 = vand.u32 %v93, 4294901760
    %1031 = vmatmul.mubr.f32.gmra.mrb[0].mxu0 %v1030
    %v1032 = vpop.f32.mrb[0].mxu0
    %v1033 = vadd.f32 %v866, %v1032
    %v1034 = vpop.f32.mrb[0].mxu0
    %1035 = vdwg.mxu0
    %1036 = vmatprep.subr.mxu0 0.0
    %v1037 = vand.u32 %v37, 4294901760
    %1038 = vmatpush1.msra.mxu0 %v1037
    %1039 = vmatprep.subr.mxu0 0.0
    %v1040 = vand.u32 %v38, 4294901760
    %1041 = vmatpush1.msra.mxu0 %v1040
    %1042 = vmatprep.subr.mxu0 0.0
    %1043 = vmatpush1.msra.mxu0 0.0
    %1044 = vmatprep.subr.mxu0 0.0
    %1045 = vmatpush1.msra.mxu0 0.0
    %1046 = vmatprep.subr.mxu0 0.0
    %1047 = vmatpush1.msra.mxu0 0.0
    %1048 = vmatprep.subr.mxu0 0.0
    %1049 = vmatpush1.msra.mxu0 0.0
    %1050 = vmatprep.subr.mxu0 0.0
    %1051 = vmatpush1.msra.mxu0 0.0
    %1052 = vmatprep.subr.mxu0 0.0
    %1053 = vmatpush1.msra.mxu0 0.0
    %1054 = vmatprep.subr.mxu0 0.0
    %1055 = vmatpush1.msra.mxu0 0.0
    %1056 = vmatprep.subr.mxu0 0.0
    %1057 = vmatpush1.msra.mxu0 0.0
    %1058 = vmatprep.subr.mxu0 0.0
    %1059 = vmatpush1.msra.mxu0 0.0
    %1060 = vmatprep.subr.mxu0 0.0
    %1061 = vmatpush1.msra.mxu0 0.0
    %1062 = vmatprep.subr.mxu0 0.0
    %1063 = vmatpush1.msra.mxu0 0.0
    %1064 = vmatprep.subr.mxu0 0.0
    %1065 = vmatpush1.msra.mxu0 0.0
    %1066 = vmatprep.subr.mxu0 0.0
    %1067 = vmatpush1.msra.mxu0 0.0
    %1068 = vmatprep.subr.mxu0 0.0
    %1069 = vmatpush1.msra.mxu0 0.0
    %1070 = vmatprep.subr.mxu0 0.0
    %1071 = vmatpush1.msra.mxu0 0.0
    %1072 = vmatprep.subr.mxu0 0.0
    %1073 = vmatpush1.msra.mxu0 0.0
    %1074 = vmatprep.subr.mxu0 0.0
    %1075 = vmatpush1.msra.mxu0 0.0
    %1076 = vmatprep.subr.mxu0 0.0
    %1077 = vmatpush1.msra.mxu0 0.0
    %1078 = vmatprep.subr.mxu0 0.0
    %1079 = vmatpush1.msra.mxu0 0.0
    %1080 = vmatprep.subr.mxu0 0.0
    %1081 = vmatpush1.msra.mxu0 0.0
    %1082 = vmatprep.subr.mxu0 0.0
    %1083 = vmatpush1.msra.mxu0 0.0
    %1084 = vmatprep.subr.mxu0 0.0
    %1085 = vmatpush1.msra.mxu0 0.0
    %1086 = vmatprep.subr.mxu0 0.0
    %1087 = vmatpush1.msra.mxu0 0.0
    %1088 = vmatprep.subr.mxu0 0.0
    %1089 = vmatpush1.msra.mxu0 0.0
    %1090 = vmatprep.subr.mxu0 0.0
    %1091 = vmatpush1.msra.mxu0 0.0
    %1092 = vmatprep.subr.mxu0 0.0
    %1093 = vmatpush1.msra.mxu0 0.0
    %1094 = vmatprep.subr.mxu0 0.0
    %1095 = vmatpush1.msra.mxu0 0.0
    %1096 = vmatprep.subr.mxu0 0.0
    %1097 = vmatpush1.msra.mxu0 0.0
    %1098 = vmatprep.subr.mxu0 0.0
    %1099 = vmatpush1.msra.mxu0 0.0
    %1100 = vmatprep.subr.mxu0 0.0
    %1101 = vmatpush1.msra.mxu0 0.0
    %1102 = vmatprep.mubr.f32.mxu0 0.0
    %v1103 = vand.u32 %v48, 4294901760
    %1104 = vmatmul.mubr.f32.gmra.mrb[0].mxu0 %v1103
    %v1105 = vpop.f32.mrb[0].mxu0
    %v1106 = vadd.f32 %v943, %v1105
    %v1107 = vpop.f32.mrb[0].mxu0
    %1108 = vmatprep.mubr.f32.mxu0 0.0
    %v1109 = vand.u32 %v51, 4294901760
    %1110 = vmatmul.mubr.f32.gmra.mrb[0].mxu0 %v1109
    %v1111 = vpop.f32.mrb[0].mxu0
    %v1112 = vadd.f32 %v949, %v1111
    %v1113 = vpop.f32.mrb[0].mxu0
    %1114 = vmatprep.mubr.f32.mxu0 0.0
    %v1115 = vand.u32 %v54, 4294901760
    %1116 = vmatmul.mubr.f32.gmra.mrb[0].mxu0 %v1115
    %v1117 = vpop.f32.mrb[0].mxu0
    %v1118 = vadd.f32 %v955, %v1117
    %v1119 = vpop.f32.mrb[0].mxu0
    %1120 = vmatprep.mubr.f32.mxu0 0.0
    %v1121 = vand.u32 %v57, 4294901760
    %1122 = vmatmul.mubr.f32.gmra.mrb[0].mxu0 %v1121
    %v1123 = vpop.f32.mrb[0].mxu0
    %v1124 = vadd.f32 %v961, %v1123
    %v1125 = vpop.f32.mrb[0].mxu0
    %1126 = vmatprep.mubr.f32.mxu0 0.0
    %v1127 = vand.u32 %v60, 4294901760
    %1128 = vmatmul.mubr.f32.gmra.mrb[0].mxu0 %v1127
    %v1129 = vpop.f32.mrb[0].mxu0
    %v1130 = vadd.f32 %v967, %v1129
    %v1131 = vpop.f32.mrb[0].mxu0
    %1132 = vmatprep.mubr.f32.mxu0 0.0
    %v1133 = vand.u32 %v63, 4294901760
    %1134 = vmatmul.mubr.f32.gmra.mrb[0].mxu0 %v1133
    %v1135 = vpop.f32.mrb[0].mxu0
    %v1136 = vadd.f32 %v973, %v1135
    %v1137 = vpop.f32.mrb[0].mxu0
    %1138 = vmatprep.mubr.f32.mxu0 0.0
    %v1139 = vand.u32 %v66, 4294901760
    %1140 = vmatmul.mubr.f32.gmra.mrb[0].mxu0 %v1139
    %v1141 = vpop.f32.mrb[0].mxu0
    %v1142 = vadd.f32 %v979, %v1141
    %v1143 = vpop.f32.mrb[0].mxu0
    %1144 = vmatprep.mubr.f32.mxu0 0.0
    %v1145 = vand.u32 %v69, 4294901760
    %1146 = vmatmul.mubr.f32.gmra.mrb[0].mxu0 %v1145
    %v1147 = vpop.f32.mrb[0].mxu0
    %v1148 = vadd.f32 %v985, %v1147
    %v1149 = vpop.f32.mrb[0].mxu0
    %1150 = vmatprep.mubr.f32.mxu0 0.0
    %v1151 = vand.u32 %v72, 4294901760
    %1152 = vmatmul.mubr.f32.gmra.mrb[0].mxu0 %v1151
    %v1153 = vpop.f32.mrb[0].mxu0
    %v1154 = vadd.f32 %v991, %v1153
    %v1155 = vpop.f32.mrb[0].mxu0
    %1156 = vmatprep.mubr.f32.mxu0 0.0
    %v1157 = vand.u32 %v75, 4294901760
    %1158 = vmatmul.mubr.f32.gmra.mrb[0].mxu0 %v1157
    %v1159 = vpop.f32.mrb[0].mxu0
    %v1160 = vadd.f32 %v997, %v1159
    %v1161 = vpop.f32.mrb[0].mxu0
    %1162 = vmatprep.mubr.f32.mxu0 0.0
    %v1163 = vand.u32 %v78, 4294901760
    %1164 = vmatmul.mubr.f32.gmra.mrb[0].mxu0 %v1163
    %v1165 = vpop.f32.mrb[0].mxu0
    %v1166 = vadd.f32 %v1003, %v1165
    %v1167 = vpop.f32.mrb[0].mxu0
    %1168 = vmatprep.mubr.f32.mxu0 0.0
    %v1169 = vand.u32 %v81, 4294901760
    %1170 = vmatmul.mubr.f32.gmra.mrb[0].mxu0 %v1169
    %v1171 = vpop.f32.mrb[0].mxu0
    %v1172 = vadd.f32 %v1009, %v1171
    %v1173 = vpop.f32.mrb[0].mxu0
    %1174 = vmatprep.mubr.f32.mxu0 0.0
    %v1175 = vand.u32 %v84, 4294901760
    %1176 = vmatmul.mubr.f32.gmra.mrb[0].mxu0 %v1175
    %v1177 = vpop.f32.mrb[0].mxu0
    %v1178 = vadd.f32 %v1015, %v1177
    %v1179 = vpop.f32.mrb[0].mxu0
    %1180 = vmatprep.mubr.f32.mxu0 0.0
    %v1181 = vand.u32 %v87, 4294901760
    %1182 = vmatmul.mubr.f32.gmra.mrb[0].mxu0 %v1181
    %v1183 = vpop.f32.mrb[0].mxu0
    %v1184 = vadd.f32 %v1021, %v1183
    %v1185 = vpop.f32.mrb[0].mxu0
    %1186 = vmatprep.mubr.f32.mxu0 0.0
    %v1187 = vand.u32 %v90, 4294901760
    %1188 = vmatmul.mubr.f32.gmra.mrb[0].mxu0 %v1187
    %v1189 = vpop.f32.mrb[0].mxu0
    %v1190 = vadd.f32 %v1027, %v1189
    %v1191 = vpop.f32.mrb[0].mxu0
    %1192 = vmatprep.mubr.f32.mxu0 0.0
    %v1193 = vand.u32 %v93, 4294901760
    %1194 = vmatmul.mubr.f32.gmra.mrb[0].mxu0 %v1193
    %v1195 = vpop.f32.mrb[0].mxu0
    %v1196 = vadd.f32 %v1033, %v1195
    %v1197 = vpop.f32.mrb[0].mxu0
    %1198 = vdwg.mxu0
    %v1199 = vmax.f32 %v1106, 0.0
    %v1200 = vmax.f32 %v1112, 0.0
    %v1201 = vmax.f32 %v1118, 0.0
    %v1202 = vmax.f32 %v1124, 0.0
    %v1203 = vmax.f32 %v1130, 0.0
    %v1204 = vmax.f32 %v1136, 0.0
    %v1205 = vmax.f32 %v1142, 0.0
    %v1206 = vmax.f32 %v1148, 0.0
    %v1207 = vmax.f32 %v1154, 0.0
    %v1208 = vmax.f32 %v1160, 0.0
    %v1209 = vmax.f32 %v1166, 0.0
    %v1210 = vmax.f32 %v1172, 0.0
    %v1211 = vmax.f32 %v1178, 0.0
    %v1212 = vmax.f32 %v1184, 0.0
    %v1213 = vmax.f32 %v1190, 0.0
    %v1214 = vmax.f32 %v1196, 0.0
    %v1215 = vld [vmem:[%s3] sm:$0xff]
    %v1216 = vld [vmem:[%s3 + $0x8] sm:$0xff]
    %v1217 = vld [vmem:[%s3 + $0x10] sm:$0xff]
    %v1218 = vld [vmem:[%s3 + $0x18] sm:$0xff]
    %v1219 = vld [vmem:[%s4] sm:$0x1]
    %v1221 = vlaneseq
    %v1222 = vshrl.u32 %v1221, 7
    %v1223 = vsub.s32 0, %v1222
    %v1224 = vrot.slane %v1219, %v1223
    %vm1226 = vcmask 261120
    %v1228 = vsel %vm1226, %v1199, 0
    %v1231 = vsel %vm1226, %v1200, 0
    %v1234 = vsel %vm1226, %v1201, 0
    %v1237 = vsel %vm1226, %v1202, 0
    %v1240 = vsel %vm1226, %v1203, 0
    %v1243 = vsel %vm1226, %v1204, 0
    %v1246 = vsel %vm1226, %v1205, 0
    %v1249 = vsel %vm1226, %v1206, 0
    %v1252 = vsel %vm1226, %v1207, 0
    %v1255 = vsel %vm1226, %v1208, 0
    %v1258 = vsel %vm1226, %v1209, 0
    %v1261 = vsel %vm1226, %v1210, 0
    %v1264 = vsel %vm1226, %v1211, 0
    %v1267 = vsel %vm1226, %v1212, 0
    %v1270 = vsel %vm1226, %v1213, 0
    %v1273 = vsel %vm1226, %v1214, 0
    %1275 = vmatprep.subr.mxu0 0.0
    %v1276 = vand.u32 %v1215, 4294901760
    %1277 = vmatpush1.msra.mxu0 %v1276
    %1278 = vmatprep.subr.mxu0 0.0
    %v1279 = vand.u32 %v1216, 4294901760
    %1280 = vmatpush1.msra.mxu0 %v1279
    %1281 = vmatprep.subr.mxu0 0.0
    %v1282 = vand.u32 %v1217, 4294901760
    %1283 = vmatpush1.msra.mxu0 %v1282
    %1284 = vmatprep.subr.mxu0 0.0
    %v1285 = vand.u32 %v1218, 4294901760
    %1286 = vmatpush1.msra.mxu0 %v1285
    %1287 = vmatprep.subr.mxu0 0.0
    %1288 = vmatpush1.msra.mxu0 0.0
    %1289 = vmatprep.subr.mxu0 0.0
    %1290 = vmatpush1.msra.mxu0 0.0
    %1291 = vmatprep.subr.mxu0 0.0
    %1292 = vmatpush1.msra.mxu0 0.0
    %1293 = vmatprep.subr.mxu0 0.0
    %1294 = vmatpush1.msra.mxu0 0.0
    %1295 = vmatprep.subr.mxu0 0.0
    %1296 = vmatpush1.msra.mxu0 0.0
    %1297 = vmatprep.subr.mxu0 0.0
    %1298 = vmatpush1.msra.mxu0 0.0
    %1299 = vmatprep.subr.mxu0 0.0
    %1300 = vmatpush1.msra.mxu0 0.0
    %1301 = vmatprep.subr.mxu0 0.0
    %1302 = vmatpush1.msra.mxu0 0.0
    %1303 = vmatprep.subr.mxu0 0.0
    %1304 = vmatpush1.msra.mxu0 0.0
    %1305 = vmatprep.subr.mxu0 0.0
    %1306 = vmatpush1.msra.mxu0 0.0
    %1307 = vmatprep.subr.mxu0 0.0
    %1308 = vmatpush1.msra.mxu0 0.0
    %1309 = vmatprep.subr.mxu0 0.0
    %1310 = vmatpush1.msra.mxu0 0.0
    %1311 = vmatprep.subr.mxu0 0.0
    %1312 = vmatpush1.msra.mxu0 0.0
    %1313 = vmatprep.subr.mxu0 0.0
    %1314 = vmatpush1.msra.mxu0 0.0
    %1315 = vmatprep.subr.mxu0 0.0
    %1316 = vmatpush1.msra.mxu0 0.0
    %1317 = vmatprep.subr.mxu0 0.0
    %1318 = vmatpush1.msra.mxu0 0.0
    %1319 = vmatprep.subr.mxu0 0.0
    %1320 = vmatpush1.msra.mxu0 0.0
    %1321 = vmatprep.subr.mxu0 0.0
    %1322 = vmatpush1.msra.mxu0 0.0
    %1323 = vmatprep.subr.mxu0 0.0
    %1324 = vmatpush1.msra.mxu0 0.0
    %1325 = vmatprep.subr.mxu0 0.0
    %1326 = vmatpush1.msra.mxu0 0.0
    %1327 = vmatprep.subr.mxu0 0.0
    %1328 = vmatpush1.msra.mxu0 0.0
    %1329 = vmatprep.subr.mxu0 0.0
    %1330 = vmatpush1.msra.mxu0 0.0
    %1331 = vmatprep.subr.mxu0 0.0
    %1332 = vmatpush1.msra.mxu0 0.0
    %1333 = vmatprep.subr.mxu0 0.0
    %1334 = vmatpush1.msra.mxu0 0.0
    %1335 = vmatprep.subr.mxu0 0.0
    %1336 = vmatpush1.msra.mxu0 0.0
    %1337 = vmatprep.subr.mxu0 0.0
    %1338 = vmatpush1.msra.mxu0 0.0
    %1339 = vmatprep.subr.mxu0 0.0
    %1340 = vmatpush1.msra.mxu0 0.0
    %1341 = vmatprep.subr.mxu0 0.0
    %1342 = vmatpush1.msra.mxu0 0.0
    %1343 = vmatprep.mubr.f32.mxu0 0.0
    %v1344 = vand.u32 %v1228, 4294901760
    %v1345 = vsub.f32 %v1228, %v1344
    %v1346 = vand.u32 %v1345, 4294901760
    %v1347 = vsub.f32 %v1345, %v1346
    %v1348 = vand.u32 %v1347, 4294901760
    %1349 = vmatmul.mubr.f32.gmra.mrb[0].mxu0 %v1348
    %v1350 = vpop.f32.mrb[0].mxu0
    %v1351 = vadd.f32 %v1224, %v1350
    %v1352 = vpop.f32.mrb[0].mxu0
    %1353 = vmatprep.mubr.f32.mxu0 0.0
    %v1354 = vand.u32 %v1231, 4294901760
    %v1355 = vsub.f32 %v1231, %v1354
    %v1356 = vand.u32 %v1355, 4294901760
    %v1357 = vsub.f32 %v1355, %v1356
    %v1358 = vand.u32 %v1357, 4294901760
    %1359 = vmatmul.mubr.f32.gmra.mrb[0].mxu0 %v1358
    %v1360 = vpop.f32.mrb[0].mxu0
    %v1361 = vadd.f32 %v1224, %v1360
    %v1362 = vpop.f32.mrb[0].mxu0
    %1363 = vmatprep.mubr.f32.mxu0 0.0
    %v1364 = vand.u32 %v1234, 4294901760
    %v1365 = vsub.f32 %v1234, %v1364
    %v1366 = vand.u32 %v1365, 4294901760
    %v1367 = vsub.f32 %v1365, %v1366
    %v1368 = vand.u32 %v1367, 4294901760
    %1369 = vmatmul.mubr.f32.gmra.mrb[0].mxu0 %v1368
    %v1370 = vpop.f32.mrb[0].mxu0
    %v1371 = vadd.f32 %v1224, %v1370
    %v1372 = vpop.f32.mrb[0].mxu0
    %1373 = vmatprep.mubr.f32.mxu0 0.0
    %v1374 = vand.u32 %v1237, 4294901760
    %v1375 = vsub.f32 %v1237, %v1374
    %v1376 = vand.u32 %v1375, 4294901760
    %v1377 = vsub.f32 %v1375, %v1376
    %v1378 = vand.u32 %v1377, 4294901760
    %1379 = vmatmul.mubr.f32.gmra.mrb[0].mxu0 %v1378
    %v1380 = vpop.f32.mrb[0].mxu0
    %v1381 = vadd.f32 %v1224, %v1380
    %v1382 = vpop.f32.mrb[0].mxu0
    %1383 = vmatprep.mubr.f32.mxu0 0.0
    %v1384 = vand.u32 %v1240, 4294901760
    %v1385 = vsub.f32 %v1240, %v1384
    %v1386 = vand.u32 %v1385, 4294901760
    %v1387 = vsub.f32 %v1385, %v1386
    %v1388 = vand.u32 %v1387, 4294901760
    %1389 = vmatmul.mubr.f32.gmra.mrb[0].mxu0 %v1388
    %v1390 = vpop.f32.mrb[0].mxu0
    %v1391 = vadd.f32 %v1224, %v1390
    %v1392 = vpop.f32.mrb[0].mxu0
    %1393 = vmatprep.mubr.f32.mxu0 0.0
    %v1394 = vand.u32 %v1243, 4294901760
    %v1395 = vsub.f32 %v1243, %v1394
    %v1396 = vand.u32 %v1395, 4294901760
    %v1397 = vsub.f32 %v1395, %v1396
    %v1398 = vand.u32 %v1397, 4294901760
    %1399 = vmatmul.mubr.f32.gmra.mrb[0].mxu0 %v1398
    %v1400 = vpop.f32.mrb[0].mxu0
    %v1401 = vadd.f32 %v1224, %v1400
    %v1402 = vpop.f32.mrb[0].mxu0
    %1403 = vmatprep.mubr.f32.mxu0 0.0
    %v1404 = vand.u32 %v1246, 4294901760
    %v1405 = vsub.f32 %v1246, %v1404
    %v1406 = vand.u32 %v1405, 4294901760
    %v1407 = vsub.f32 %v1405, %v1406
    %v1408 = vand.u32 %v1407, 4294901760
    %1409 = vmatmul.mubr.f32.gmra.mrb[0].mxu0 %v1408
    %v1410 = vpop.f32.mrb[0].mxu0
    %v1411 = vadd.f32 %v1224, %v1410
    %v1412 = vpop.f32.mrb[0].mxu0
    %1413 = vmatprep.mubr.f32.mxu0 0.0
    %v1414 = vand.u32 %v1249, 4294901760
    %v1415 = vsub.f32 %v1249, %v1414
    %v1416 = vand.u32 %v1415, 4294901760
    %v1417 = vsub.f32 %v1415, %v1416
    %v1418 = vand.u32 %v1417, 4294901760
    %1419 = vmatmul.mubr.f32.gmra.mrb[0].mxu0 %v1418
    %v1420 = vpop.f32.mrb[0].mxu0
    %v1421 = vadd.f32 %v1224, %v1420
    %v1422 = vpop.f32.mrb[0].mxu0
    %1423 = vmatprep.mubr.f32.mxu0 0.0
    %v1424 = vand.u32 %v1252, 4294901760
    %v1425 = vsub.f32 %v1252, %v1424
    %v1426 = vand.u32 %v1425, 4294901760
    %v1427 = vsub.f32 %v1425, %v1426
    %v1428 = vand.u32 %v1427, 4294901760
    %1429 = vmatmul.mubr.f32.gmra.mrb[0].mxu0 %v1428
    %v1430 = vpop.f32.mrb[0].mxu0
    %v1431 = vadd.f32 %v1224, %v1430
    %v1432 = vpop.f32.mrb[0].mxu0
    %1433 = vmatprep.mubr.f32.mxu0 0.0
    %v1434 = vand.u32 %v1255, 4294901760
    %v1435 = vsub.f32 %v1255, %v1434
    %v1436 = vand.u32 %v1435, 4294901760
    %v1437 = vsub.f32 %v1435, %v1436
    %v1438 = vand.u32 %v1437, 4294901760
    %1439 = vmatmul.mubr.f32.gmra.mrb[0].mxu0 %v1438
    %v1440 = vpop.f32.mrb[0].mxu0
    %v1441 = vadd.f32 %v1224, %v1440
    %v1442 = vpop.f32.mrb[0].mxu0
    %1443 = vmatprep.mubr.f32.mxu0 0.0
    %v1444 = vand.u32 %v1258, 4294901760
    %v1445 = vsub.f32 %v1258, %v1444
    %v1446 = vand.u32 %v1445, 4294901760
    %v1447 = vsub.f32 %v1445, %v1446
    %v1448 = vand.u32 %v1447, 4294901760
    %1449 = vmatmul.mubr.f32.gmra.mrb[0].mxu0 %v1448
    %v1450 = vpop.f32.mrb[0].mxu0
    %v1451 = vadd.f32 %v1224, %v1450
    %v1452 = vpop.f32.mrb[0].mxu0
    %1453 = vmatprep.mubr.f32.mxu0 0.0
    %v1454 = vand.u32 %v1261, 4294901760
    %v1455 = vsub.f32 %v1261, %v1454
    %v1456 = vand.u32 %v1455, 4294901760
    %v1457 = vsub.f32 %v1455, %v1456
    %v1458 = vand.u32 %v1457, 4294901760
    %1459 = vmatmul.mubr.f32.gmra.mrb[0].mxu0 %v1458
    %v1460 = vpop.f32.mrb[0].mxu0
    %v1461 = vadd.f32 %v1224, %v1460
    %v1462 = vpop.f32.mrb[0].mxu0
    %1463 = vmatprep.mubr.f32.mxu0 0.0
    %v1464 = vand.u32 %v1264, 4294901760
    %v1465 = vsub.f32 %v1264, %v1464
    %v1466 = vand.u32 %v1465, 4294901760
    %v1467 = vsub.f32 %v1465, %v1466
    %v1468 = vand.u32 %v1467, 4294901760
    %1469 = vmatmul.mubr.f32.gmra.mrb[0].mxu0 %v1468
    %v1470 = vpop.f32.mrb[0].mxu0
    %v1471 = vadd.f32 %v1224, %v1470
    %v1472 = vpop.f32.mrb[0].mxu0
    %1473 = vmatprep.mubr.f32.mxu0 0.0
    %v1474 = vand.u32 %v1267, 4294901760
    %v1475 = vsub.f32 %v1267, %v1474
    %v1476 = vand.u32 %v1475, 4294901760
    %v1477 = vsub.f32 %v1475, %v1476
    %v1478 = vand.u32 %v1477, 4294901760
    %1479 = vmatmul.mubr.f32.gmra.mrb[0].mxu0 %v1478
    %v1480 = vpop.f32.mrb[0].mxu0
    %v1481 = vadd.f32 %v1224, %v1480
    %v1482 = vpop.f32.mrb[0].mxu0
    %1483 = vmatprep.mubr.f32.mxu0 0.0
    %v1484 = vand.u32 %v1270, 4294901760
    %v1485 = vsub.f32 %v1270, %v1484
    %v1486 = vand.u32 %v1485, 4294901760
    %v1487 = vsub.f32 %v1485, %v1486
    %v1488 = vand.u32 %v1487, 4294901760
    %1489 = vmatmul.mubr.f32.gmra.mrb[0].mxu0 %v1488
    %v1490 = vpop.f32.mrb[0].mxu0
    %v1491 = vadd.f32 %v1224, %v1490
    %v1492 = vpop.f32.mrb[0].mxu0
    %1493 = vmatprep.mubr.f32.mxu0 0.0
    %v1494 = vand.u32 %v1273, 4294901760
    %v1495 = vsub.f32 %v1273, %v1494
    %v1496 = vand.u32 %v1495, 4294901760
    %v1497 = vsub.f32 %v1495, %v1496
    %v1498 = vand.u32 %v1497, 4294901760
    %1499 = vmatmul.mubr.f32.gmra.mrb[0].mxu0 %v1498
    %v1500 = vpop.f32.mrb[0].mxu0
    %v1501 = vadd.f32 %v1224, %v1500
    %v1502 = vpop.f32.mrb[0].mxu0
    %1503 = vdwg.mxu0
    %1504 = vmatprep.subr.mxu0 0.0
    %v1505 = vand.u32 %v1215, 4294901760
    %v1506 = vsub.f32 %v1215, %v1505
    %v1507 = vand.u32 %v1506, 4294901760
    %v1508 = vsub.f32 %v1506, %v1507
    %v1509 = vand.u32 %v1508, 4294901760
    %1510 = vmatpush1.msra.mxu0 %v1509
    %1511 = vmatprep.subr.mxu0 0.0
    %v1512 = vand.u32 %v1216, 4294901760
    %v1513 = vsub.f32 %v1216, %v1512
    %v1514 = vand.u32 %v1513, 4294901760
    %v1515 = vsub.f32 %v1513, %v1514
    %v1516 = vand.u32 %v1515, 4294901760
    %1517 = vmatpush1.msra.mxu0 %v1516
    %1518 = vmatprep.subr.mxu0 0.0
    %v1519 = vand.u32 %v1217, 4294901760
    %v1520 = vsub.f32 %v1217, %v1519
    %v1521 = vand.u32 %v1520, 4294901760
    %v1522 = vsub.f32 %v1520, %v1521
    %v1523 = vand.u32 %v1522, 4294901760
    %1524 = vmatpush1.msra.mxu0 %v1523
    %1525 = vmatprep.subr.mxu0 0.0
    %v1526 = vand.u32 %v1218, 4294901760
    %v1527 = vsub.f32 %v1218, %v1526
    %v1528 = vand.u32 %v1527, 4294901760
    %v1529 = vsub.f32 %v1527, %v1528
    %v1530 = vand.u32 %v1529, 4294901760
    %1531 = vmatpush1.msra.mxu0 %v1530
    %1532 = vmatprep.subr.mxu0 0.0
    %1533 = vmatpush1.msra.mxu0 0.0
    %1534 = vmatprep.subr.mxu0 0.0
    %1535 = vmatpush1.msra.mxu0 0.0
    %1536 = vmatprep.subr.mxu0 0.0
    %1537 = vmatpush1.msra.mxu0 0.0
    %1538 = vmatprep.subr.mxu0 0.0
    %1539 = vmatpush1.msra.mxu0 0.0
    %1540 = vmatprep.subr.mxu0 0.0
    %1541 = vmatpush1.msra.mxu0 0.0
    %1542 = vmatprep.subr.mxu0 0.0
    %1543 = vmatpush1.msra.mxu0 0.0
    %1544 = vmatprep.subr.mxu0 0.0
    %1545 = vmatpush1.msra.mxu0 0.0
    %1546 = vmatprep.subr.mxu0 0.0
    %1547 = vmatpush1.msra.mxu0 0.0
    %1548 = vmatprep.subr.mxu0 0.0
    %1549 = vmatpush1.msra.mxu0 0.0
    %1550 = vmatprep.subr.mxu0 0.0
    %1551 = vmatpush1.msra.mxu0 0.0
    %1552 = vmatprep.subr.mxu0 0.0
    %1553 = vmatpush1.msra.mxu0 0.0
    %1554 = vmatprep.subr.mxu0 0.0
    %1555 = vmatpush1.msra.mxu0 0.0
    %1556 = vmatprep.subr.mxu0 0.0
    %1557 = vmatpush1.msra.mxu0 0.0
    %1558 = vmatprep.subr.mxu0 0.0
    %1559 = vmatpush1.msra.mxu0 0.0
    %1560 = vmatprep.subr.mxu0 0.0
    %1561 = vmatpush1.msra.mxu0 0.0
    %1562 = vmatprep.subr.mxu0 0.0
    %1563 = vmatpush1.msra.mxu0 0.0
    %1564 = vmatprep.subr.mxu0 0.0
    %1565 = vmatpush1.msra.mxu0 0.0
    %1566 = vmatprep.subr.mxu0 0.0
    %1567 = vmatpush1.msra.mxu0 0.0
    %1568 = vmatprep.subr.mxu0 0.0
    %1569 = vmatpush1.msra.mxu0 0.0
    %1570 = vmatprep.subr.mxu0 0.0
    %1571 = vmatpush1.msra.mxu0 0.0
    %1572 = vmatprep.subr.mxu0 0.0
    %1573 = vmatpush1.msra.mxu0 0.0
    %1574 = vmatprep.subr.mxu0 0.0
    %1575 = vmatpush1.msra.mxu0 0.0
    %1576 = vmatprep.subr.mxu0 0.0
    %1577 = vmatpush1.msra.mxu0 0.0
    %1578 = vmatprep.subr.mxu0 0.0
    %1579 = vmatpush1.msra.mxu0 0.0
    %1580 = vmatprep.subr.mxu0 0.0
    %1581 = vmatpush1.msra.mxu0 0.0
    %1582 = vmatprep.subr.mxu0 0.0
    %1583 = vmatpush1.msra.mxu0 0.0
    %1584 = vmatprep.subr.mxu0 0.0
    %1585 = vmatpush1.msra.mxu0 0.0
    %1586 = vmatprep.subr.mxu0 0.0
    %1587 = vmatpush1.msra.mxu0 0.0
    %1588 = vmatprep.mubr.f32.mxu0 0.0
    %v1589 = vand.u32 %v1228, 4294901760
    %1590 = vmatmul.mubr.f32.gmra.mrb[0].mxu0 %v1589
    %v1591 = vpop.f32.mrb[0].mxu0
    %v1592 = vadd.f32 %v1351, %v1591
    %v1593 = vpop.f32.mrb[0].mxu0
    %1594 = vmatprep.mubr.f32.mxu0 0.0
    %v1595 = vand.u32 %v1231, 4294901760
    %1596 = vmatmul.mubr.f32.gmra.mrb[0].mxu0 %v1595
    %v1597 = vpop.f32.mrb[0].mxu0
    %v1598 = vadd.f32 %v1361, %v1597
    %v1599 = vpop.f32.mrb[0].mxu0
    %1600 = vmatprep.mubr.f32.mxu0 0.0
    %v1601 = vand.u32 %v1234, 4294901760
    %1602 = vmatmul.mubr.f32.gmra.mrb[0].mxu0 %v1601
    %v1603 = vpop.f32.mrb[0].mxu0
    %v1604 = vadd.f32 %v1371, %v1603
    %v1605 = vpop.f32.mrb[0].mxu0
    %1606 = vmatprep.mubr.f32.mxu0 0.0
    %v1607 = vand.u32 %v1237, 4294901760
    %1608 = vmatmul.mubr.f32.gmra.mrb[0].mxu0 %v1607
    %v1609 = vpop.f32.mrb[0].mxu0
    %v1610 = vadd.f32 %v1381, %v1609
    %v1611 = vpop.f32.mrb[0].mxu0
    %1612 = vmatprep.mubr.f32.mxu0 0.0
    %v1613 = vand.u32 %v1240, 4294901760
    %1614 = vmatmul.mubr.f32.gmra.mrb[0].mxu0 %v1613
    %v1615 = vpop.f32.mrb[0].mxu0
    %v1616 = vadd.f32 %v1391, %v1615
    %v1617 = vpop.f32.mrb[0].mxu0
    %1618 = vmatprep.mubr.f32.mxu0 0.0
    %v1619 = vand.u32 %v1243, 4294901760
    %1620 = vmatmul.mubr.f32.gmra.mrb[0].mxu0 %v1619
    %v1621 = vpop.f32.mrb[0].mxu0
    %v1622 = vadd.f32 %v1401, %v1621
    %v1623 = vpop.f32.mrb[0].mxu0
    %1624 = vmatprep.mubr.f32.mxu0 0.0
    %v1625 = vand.u32 %v1246, 4294901760
    %1626 = vmatmul.mubr.f32.gmra.mrb[0].mxu0 %v1625
    %v1627 = vpop.f32.mrb[0].mxu0
    %v1628 = vadd.f32 %v1411, %v1627
    %v1629 = vpop.f32.mrb[0].mxu0
    %1630 = vmatprep.mubr.f32.mxu0 0.0
    %v1631 = vand.u32 %v1249, 4294901760
    %1632 = vmatmul.mubr.f32.gmra.mrb[0].mxu0 %v1631
    %v1633 = vpop.f32.mrb[0].mxu0
    %v1634 = vadd.f32 %v1421, %v1633
    %v1635 = vpop.f32.mrb[0].mxu0
    %1636 = vmatprep.mubr.f32.mxu0 0.0
    %v1637 = vand.u32 %v1252, 4294901760
    %1638 = vmatmul.mubr.f32.gmra.mrb[0].mxu0 %v1637
    %v1639 = vpop.f32.mrb[0].mxu0
    %v1640 = vadd.f32 %v1431, %v1639
    %v1641 = vpop.f32.mrb[0].mxu0
    %1642 = vmatprep.mubr.f32.mxu0 0.0
    %v1643 = vand.u32 %v1255, 4294901760
    %1644 = vmatmul.mubr.f32.gmra.mrb[0].mxu0 %v1643
    %v1645 = vpop.f32.mrb[0].mxu0
    %v1646 = vadd.f32 %v1441, %v1645
    %v1647 = vpop.f32.mrb[0].mxu0
    %1648 = vmatprep.mubr.f32.mxu0 0.0
    %v1649 = vand.u32 %v1258, 4294901760
    %1650 = vmatmul.mubr.f32.gmra.mrb[0].mxu0 %v1649
    %v1651 = vpop.f32.mrb[0].mxu0
    %v1652 = vadd.f32 %v1451, %v1651
    %v1653 = vpop.f32.mrb[0].mxu0
    %1654 = vmatprep.mubr.f32.mxu0 0.0
    %v1655 = vand.u32 %v1261, 4294901760
    %1656 = vmatmul.mubr.f32.gmra.mrb[0].mxu0 %v1655
    %v1657 = vpop.f32.mrb[0].mxu0
    %v1658 = vadd.f32 %v1461, %v1657
    %v1659 = vpop.f32.mrb[0].mxu0
    %1660 = vmatprep.mubr.f32.mxu0 0.0
    %v1661 = vand.u32 %v1264, 4294901760
    %1662 = vmatmul.mubr.f32.gmra.mrb[0].mxu0 %v1661
    %v1663 = vpop.f32.mrb[0].mxu0
    %v1664 = vadd.f32 %v1471, %v1663
    %v1665 = vpop.f32.mrb[0].mxu0
    %1666 = vmatprep.mubr.f32.mxu0 0.0
    %v1667 = vand.u32 %v1267, 4294901760
    %1668 = vmatmul.mubr.f32.gmra.mrb[0].mxu0 %v1667
    %v1669 = vpop.f32.mrb[0].mxu0
    %v1670 = vadd.f32 %v1481, %v1669
    %v1671 = vpop.f32.mrb[0].mxu0
    %1672 = vmatprep.mubr.f32.mxu0 0.0
    %v1673 = vand.u32 %v1270, 4294901760
    %1674 = vmatmul.mubr.f32.gmra.mrb[0].mxu0 %v1673
    %v1675 = vpop.f32.mrb[0].mxu0
    %v1676 = vadd.f32 %v1491, %v1675
    %v1677 = vpop.f32.mrb[0].mxu0
    %1678 = vmatprep.mubr.f32.mxu0 0.0
    %v1679 = vand.u32 %v1273, 4294901760
    %1680 = vmatmul.mubr.f32.gmra.mrb[0].mxu0 %v1679
    %v1681 = vpop.f32.mrb[0].mxu0
    %v1682 = vadd.f32 %v1501, %v1681
    %v1683 = vpop.f32.mrb[0].mxu0
    %1684 = vdwg.mxu0
    %1685 = vmatprep.subr.mxu0 0.0
    %v1686 = vand.u32 %v1215, 4294901760
    %v1687 = vsub.f32 %v1215, %v1686
    %1688 = vmatpush1.msra.mxu0 %v1687
    %1689 = vmatprep.subr.mxu0 0.0
    %v1690 = vand.u32 %v1216, 4294901760
    %v1691 = vsub.f32 %v1216, %v1690
    %1692 = vmatpush1.msra.mxu0 %v1691
    %1693 = vmatprep.subr.mxu0 0.0
    %v1694 = vand.u32 %v1217, 4294901760
    %v1695 = vsub.f32 %v1217, %v1694
    %1696 = vmatpush1.msra.mxu0 %v1695
    %1697 = vmatprep.subr.mxu0 0.0
    %v1698 = vand.u32 %v1218, 4294901760
    %v1699 = vsub.f32 %v1218, %v1698
    %1700 = vmatpush1.msra.mxu0 %v1699
    %1701 = vmatprep.subr.mxu0 0.0
    %1702 = vmatpush1.msra.mxu0 0.0
    %1703 = vmatprep.subr.mxu0 0.0
    %1704 = vmatpush1.msra.mxu0 0.0
    %1705 = vmatprep.subr.mxu0 0.0
    %1706 = vmatpush1.msra.mxu0 0.0
    %1707 = vmatprep.subr.mxu0 0.0
    %1708 = vmatpush1.msra.mxu0 0.0
    %1709 = vmatprep.subr.mxu0 0.0
    %1710 = vmatpush1.msra.mxu0 0.0
    %1711 = vmatprep.subr.mxu0 0.0
    %1712 = vmatpush1.msra.mxu0 0.0
    %1713 = vmatprep.subr.mxu0 0.0
    %1714 = vmatpush1.msra.mxu0 0.0
    %1715 = vmatprep.subr.mxu0 0.0
    %1716 = vmatpush1.msra.mxu0 0.0
    %1717 = vmatprep.subr.mxu0 0.0
    %1718 = vmatpush1.msra.mxu0 0.0
    %1719 = vmatprep.subr.mxu0 0.0
    %1720 = vmatpush1.msra.mxu0 0.0
    %1721 = vmatprep.subr.mxu0 0.0
    %1722 = vmatpush1.msra.mxu0 0.0
    %1723 = vmatprep.subr.mxu0 0.0
    %1724 = vmatpush1.msra.mxu0 0.0
    %1725 = vmatprep.subr.mxu0 0.0
    %1726 = vmatpush1.msra.mxu0 0.0
    %1727 = vmatprep.subr.mxu0 0.0
    %1728 = vmatpush1.msra.mxu0 0.0
    %1729 = vmatprep.subr.mxu0 0.0
    %1730 = vmatpush1.msra.mxu0 0.0
    %1731 = vmatprep.subr.mxu0 0.0
    %1732 = vmatpush1.msra.mxu0 0.0
    %1733 = vmatprep.subr.mxu0 0.0
    %1734 = vmatpush1.msra.mxu0 0.0
    %1735 = vmatprep.subr.mxu0 0.0
    %1736 = vmatpush1.msra.mxu0 0.0
    %1737 = vmatprep.subr.mxu0 0.0
    %1738 = vmatpush1.msra.mxu0 0.0
    %1739 = vmatprep.subr.mxu0 0.0
    %1740 = vmatpush1.msra.mxu0 0.0
    %1741 = vmatprep.subr.mxu0 0.0
    %1742 = vmatpush1.msra.mxu0 0.0
    %1743 = vmatprep.subr.mxu0 0.0
    %1744 = vmatpush1.msra.mxu0 0.0
    %1745 = vmatprep.subr.mxu0 0.0
    %1746 = vmatpush1.msra.mxu0 0.0
    %1747 = vmatprep.subr.mxu0 0.0
    %1748 = vmatpush1.msra.mxu0 0.0
    %1749 = vmatprep.subr.mxu0 0.0
    %1750 = vmatpush1.msra.mxu0 0.0
    %1751 = vmatprep.subr.mxu0 0.0
    %1752 = vmatpush1.msra.mxu0 0.0
    %1753 = vmatprep.subr.mxu0 0.0
    %1754 = vmatpush1.msra.mxu0 0.0
    %1755 = vmatprep.subr.mxu0 0.0
    %1756 = vmatpush1.msra.mxu0 0.0
    %1757 = vmatprep.mubr.f32.mxu0 0.0
    %v1758 = vand.u32 %v1228, 4294901760
    %v1759 = vsub.f32 %v1228, %v1758
    %1760 = vmatmul.mubr.f32.gmra.mrb[0].mxu0 %v1759
    %v1761 = vpop.f32.mrb[0].mxu0
    %v1762 = vadd.f32 %v1592, %v1761
    %v1763 = vpop.f32.mrb[0].mxu0
    %1764 = vmatprep.mubr.f32.mxu0 0.0
    %v1765 = vand.u32 %v1231, 4294901760
    %v1766 = vsub.f32 %v1231, %v1765
    %1767 = vmatmul.mubr.f32.gmra.mrb[0].mxu0 %v1766
    %v1768 = vpop.f32.mrb[0].mxu0
    %v1769 = vadd.f32 %v1598, %v1768
    %v1770 = vpop.f32.mrb[0].mxu0
    %1771 = vmatprep.mubr.f32.mxu0 0.0
    %v1772 = vand.u32 %v1234, 4294901760
    %v1773 = vsub.f32 %v1234, %v1772
    %1774 = vmatmul.mubr.f32.gmra.mrb[0].mxu0 %v1773
    %v1775 = vpop.f32.mrb[0].mxu0
    %v1776 = vadd.f32 %v1604, %v1775
    %v1777 = vpop.f32.mrb[0].mxu0
    %1778 = vmatprep.mubr.f32.mxu0 0.0
    %v1779 = vand.u32 %v1237, 4294901760
    %v1780 = vsub.f32 %v1237, %v1779
    %1781 = vmatmul.mubr.f32.gmra.mrb[0].mxu0 %v1780
    %v1782 = vpop.f32.mrb[0].mxu0
    %v1783 = vadd.f32 %v1610, %v1782
    %v1784 = vpop.f32.mrb[0].mxu0
    %1785 = vmatprep.mubr.f32.mxu0 0.0
    %v1786 = vand.u32 %v1240, 4294901760
    %v1787 = vsub.f32 %v1240, %v1786
    %1788 = vmatmul.mubr.f32.gmra.mrb[0].mxu0 %v1787
    %v1789 = vpop.f32.mrb[0].mxu0
    %v1790 = vadd.f32 %v1616, %v1789
    %v1791 = vpop.f32.mrb[0].mxu0
    %1792 = vmatprep.mubr.f32.mxu0 0.0
    %v1793 = vand.u32 %v1243, 4294901760
    %v1794 = vsub.f32 %v1243, %v1793
    %1795 = vmatmul.mubr.f32.gmra.mrb[0].mxu0 %v1794
    %v1796 = vpop.f32.mrb[0].mxu0
    %v1797 = vadd.f32 %v1622, %v1796
    %v1798 = vpop.f32.mrb[0].mxu0
    %1799 = vmatprep.mubr.f32.mxu0 0.0
    %v1800 = vand.u32 %v1246, 4294901760
    %v1801 = vsub.f32 %v1246, %v1800
    %1802 = vmatmul.mubr.f32.gmra.mrb[0].mxu0 %v1801
    %v1803 = vpop.f32.mrb[0].mxu0
    %v1804 = vadd.f32 %v1628, %v1803
    %v1805 = vpop.f32.mrb[0].mxu0
    %1806 = vmatprep.mubr.f32.mxu0 0.0
    %v1807 = vand.u32 %v1249, 4294901760
    %v1808 = vsub.f32 %v1249, %v1807
    %1809 = vmatmul.mubr.f32.gmra.mrb[0].mxu0 %v1808
    %v1810 = vpop.f32.mrb[0].mxu0
    %v1811 = vadd.f32 %v1634, %v1810
    %v1812 = vpop.f32.mrb[0].mxu0
    %1813 = vmatprep.mubr.f32.mxu0 0.0
    %v1814 = vand.u32 %v1252, 4294901760
    %v1815 = vsub.f32 %v1252, %v1814
    %1816 = vmatmul.mubr.f32.gmra.mrb[0].mxu0 %v1815
    %v1817 = vpop.f32.mrb[0].mxu0
    %v1818 = vadd.f32 %v1640, %v1817
    %v1819 = vpop.f32.mrb[0].mxu0
    %1820 = vmatprep.mubr.f32.mxu0 0.0
    %v1821 = vand.u32 %v1255, 4294901760
    %v1822 = vsub.f32 %v1255, %v1821
    %1823 = vmatmul.mubr.f32.gmra.mrb[0].mxu0 %v1822
    %v1824 = vpop.f32.mrb[0].mxu0
    %v1825 = vadd.f32 %v1646, %v1824
    %v1826 = vpop.f32.mrb[0].mxu0
    %1827 = vmatprep.mubr.f32.mxu0 0.0
    %v1828 = vand.u32 %v1258, 4294901760
    %v1829 = vsub.f32 %v1258, %v1828
    %1830 = vmatmul.mubr.f32.gmra.mrb[0].mxu0 %v1829
    %v1831 = vpop.f32.mrb[0].mxu0
    %v1832 = vadd.f32 %v1652, %v1831
    %v1833 = vpop.f32.mrb[0].mxu0
    %1834 = vmatprep.mubr.f32.mxu0 0.0
    %v1835 = vand.u32 %v1261, 4294901760
    %v1836 = vsub.f32 %v1261, %v1835
    %1837 = vmatmul.mubr.f32.gmra.mrb[0].mxu0 %v1836
    %v1838 = vpop.f32.mrb[0].mxu0
    %v1839 = vadd.f32 %v1658, %v1838
    %v1840 = vpop.f32.mrb[0].mxu0
    %1841 = vmatprep.mubr.f32.mxu0 0.0
    %v1842 = vand.u32 %v1264, 4294901760
    %v1843 = vsub.f32 %v1264, %v1842
    %1844 = vmatmul.mubr.f32.gmra.mrb[0].mxu0 %v1843
    %v1845 = vpop.f32.mrb[0].mxu0
    %v1846 = vadd.f32 %v1664, %v1845
    %v1847 = vpop.f32.mrb[0].mxu0
    %1848 = vmatprep.mubr.f32.mxu0 0.0
    %v1849 = vand.u32 %v1267, 4294901760
    %v1850 = vsub.f32 %v1267, %v1849
    %1851 = vmatmul.mubr.f32.gmra.mrb[0].mxu0 %v1850
    %v1852 = vpop.f32.mrb[0].mxu0
    %v1853 = vadd.f32 %v1670, %v1852
    %v1854 = vpop.f32.mrb[0].mxu0
    %1855 = vmatprep.mubr.f32.mxu0 0.0
    %v1856 = vand.u32 %v1270, 4294901760
    %v1857 = vsub.f32 %v1270, %v1856
    %1858 = vmatmul.mubr.f32.gmra.mrb[0].mxu0 %v1857
    %v1859 = vpop.f32.mrb[0].mxu0
    %v1860 = vadd.f32 %v1676, %v1859
    %v1861 = vpop.f32.mrb[0].mxu0
    %1862 = vmatprep.mubr.f32.mxu0 0.0
    %v1863 = vand.u32 %v1273, 4294901760
    %v1864 = vsub.f32 %v1273, %v1863
    %1865 = vmatmul.mubr.f32.gmra.mrb[0].mxu0 %v1864
    %v1866 = vpop.f32.mrb[0].mxu0
    %v1867 = vadd.f32 %v1682, %v1866
    %v1868 = vpop.f32.mrb[0].mxu0
    %1869 = vdwg.mxu0
    %1870 = vmatprep.subr.mxu0 0.0
    %v1871 = vand.u32 %v1215, 4294901760
    %1872 = vmatpush1.msra.mxu0 %v1871
    %1873 = vmatprep.subr.mxu0 0.0
    %v1874 = vand.u32 %v1216, 4294901760
    %1875 = vmatpush1.msra.mxu0 %v1874
    %1876 = vmatprep.subr.mxu0 0.0
    %v1877 = vand.u32 %v1217, 4294901760
    %1878 = vmatpush1.msra.mxu0 %v1877
    %1879 = vmatprep.subr.mxu0 0.0
    %v1880 = vand.u32 %v1218, 4294901760
    %1881 = vmatpush1.msra.mxu0 %v1880
    %1882 = vmatprep.subr.mxu0 0.0
    %1883 = vmatpush1.msra.mxu0 0.0
    %1884 = vmatprep.subr.mxu0 0.0
    %1885 = vmatpush1.msra.mxu0 0.0
    %1886 = vmatprep.subr.mxu0 0.0
    %1887 = vmatpush1.msra.mxu0 0.0
    %1888 = vmatprep.subr.mxu0 0.0
    %1889 = vmatpush1.msra.mxu0 0.0
    %1890 = vmatprep.subr.mxu0 0.0
    %1891 = vmatpush1.msra.mxu0 0.0
    %1892 = vmatprep.subr.mxu0 0.0
    %1893 = vmatpush1.msra.mxu0 0.0
    %1894 = vmatprep.subr.mxu0 0.0
    %1895 = vmatpush1.msra.mxu0 0.0
    %1896 = vmatprep.subr.mxu0 0.0
    %1897 = vmatpush1.msra.mxu0 0.0
    %1898 = vmatprep.subr.mxu0 0.0
    %1899 = vmatpush1.msra.mxu0 0.0
    %1900 = vmatprep.subr.mxu0 0.0
    %1901 = vmatpush1.msra.mxu0 0.0
    %1902 = vmatprep.subr.mxu0 0.0
    %1903 = vmatpush1.msra.mxu0 0.0
    %1904 = vmatprep.subr.mxu0 0.0
    %1905 = vmatpush1.msra.mxu0 0.0
    %1906 = vmatprep.subr.mxu0 0.0
    %1907 = vmatpush1.msra.mxu0 0.0
    %1908 = vmatprep.subr.mxu0 0.0
    %1909 = vmatpush1.msra.mxu0 0.0
    %1910 = vmatprep.subr.mxu0 0.0
    %1911 = vmatpush1.msra.mxu0 0.0
    %1912 = vmatprep.subr.mxu0 0.0
    %1913 = vmatpush1.msra.mxu0 0.0
    %1914 = vmatprep.subr.mxu0 0.0
    %1915 = vmatpush1.msra.mxu0 0.0
    %1916 = vmatprep.subr.mxu0 0.0
    %1917 = vmatpush1.msra.mxu0 0.0
    %1918 = vmatprep.subr.mxu0 0.0
    %1919 = vmatpush1.msra.mxu0 0.0
    %1920 = vmatprep.subr.mxu0 0.0
    %1921 = vmatpush1.msra.mxu0 0.0
    %1922 = vmatprep.subr.mxu0 0.0
    %1923 = vmatpush1.msra.mxu0 0.0
    %1924 = vmatprep.subr.mxu0 0.0
    %1925 = vmatpush1.msra.mxu0 0.0
    %1926 = vmatprep.subr.mxu0 0.0
    %1927 = vmatpush1.msra.mxu0 0.0
    %1928 = vmatprep.subr.mxu0 0.0
    %1929 = vmatpush1.msra.mxu0 0.0
    %1930 = vmatprep.subr.mxu0 0.0
    %1931 = vmatpush1.msra.mxu0 0.0
    %1932 = vmatprep.subr.mxu0 0.0
    %1933 = vmatpush1.msra.mxu0 0.0
    %1934 = vmatprep.subr.mxu0 0.0
    %1935 = vmatpush1.msra.mxu0 0.0
    %1936 = vmatprep.subr.mxu0 0.0
    %1937 = vmatpush1.msra.mxu0 0.0
    %1938 = vmatprep.mubr.f32.mxu0 0.0
    %v1939 = vand.u32 %v1228, 4294901760
    %v1940 = vsub.f32 %v1228, %v1939
    %v1941 = vand.u32 %v1940, 4294901760
    %1942 = vmatmul.mubr.f32.gmra.mrb[0].mxu0 %v1941
    %v1943 = vpop.f32.mrb[0].mxu0
    %v1944 = vadd.f32 %v1762, %v1943
    %v1945 = vpop.f32.mrb[0].mxu0
    %1946 = vmatprep.mubr.f32.mxu0 0.0
    %v1947 = vand.u32 %v1231, 4294901760
    %v1948 = vsub.f32 %v1231, %v1947
    %v1949 = vand.u32 %v1948, 4294901760
    %1950 = vmatmul.mubr.f32.gmra.mrb[0].mxu0 %v1949
    %v1951 = vpop.f32.mrb[0].mxu0
    %v1952 = vadd.f32 %v1769, %v1951
    %v1953 = vpop.f32.mrb[0].mxu0
    %1954 = vmatprep.mubr.f32.mxu0 0.0
    %v1955 = vand.u32 %v1234, 4294901760
    %v1956 = vsub.f32 %v1234, %v1955
    %v1957 = vand.u32 %v1956, 4294901760
    %1958 = vmatmul.mubr.f32.gmra.mrb[0].mxu0 %v1957
    %v1959 = vpop.f32.mrb[0].mxu0
    %v1960 = vadd.f32 %v1776, %v1959
    %v1961 = vpop.f32.mrb[0].mxu0
    %1962 = vmatprep.mubr.f32.mxu0 0.0
    %v1963 = vand.u32 %v1237, 4294901760
    %v1964 = vsub.f32 %v1237, %v1963
    %v1965 = vand.u32 %v1964, 4294901760
    %1966 = vmatmul.mubr.f32.gmra.mrb[0].mxu0 %v1965
    %v1967 = vpop.f32.mrb[0].mxu0
    %v1968 = vadd.f32 %v1783, %v1967
    %v1969 = vpop.f32.mrb[0].mxu0
    %1970 = vmatprep.mubr.f32.mxu0 0.0
    %v1971 = vand.u32 %v1240, 4294901760
    %v1972 = vsub.f32 %v1240, %v1971
    %v1973 = vand.u32 %v1972, 4294901760
    %1974 = vmatmul.mubr.f32.gmra.mrb[0].mxu0 %v1973
    %v1975 = vpop.f32.mrb[0].mxu0
    %v1976 = vadd.f32 %v1790, %v1975
    %v1977 = vpop.f32.mrb[0].mxu0
    %1978 = vmatprep.mubr.f32.mxu0 0.0
    %v1979 = vand.u32 %v1243, 4294901760
    %v1980 = vsub.f32 %v1243, %v1979
    %v1981 = vand.u32 %v1980, 4294901760
    %1982 = vmatmul.mubr.f32.gmra.mrb[0].mxu0 %v1981
    %v1983 = vpop.f32.mrb[0].mxu0
    %v1984 = vadd.f32 %v1797, %v1983
    %v1985 = vpop.f32.mrb[0].mxu0
    %1986 = vmatprep.mubr.f32.mxu0 0.0
    %v1987 = vand.u32 %v1246, 4294901760
    %v1988 = vsub.f32 %v1246, %v1987
    %v1989 = vand.u32 %v1988, 4294901760
    %1990 = vmatmul.mubr.f32.gmra.mrb[0].mxu0 %v1989
    %v1991 = vpop.f32.mrb[0].mxu0
    %v1992 = vadd.f32 %v1804, %v1991
    %v1993 = vpop.f32.mrb[0].mxu0
    %1994 = vmatprep.mubr.f32.mxu0 0.0
    %v1995 = vand.u32 %v1249, 4294901760
    %v1996 = vsub.f32 %v1249, %v1995
    %v1997 = vand.u32 %v1996, 4294901760
    %1998 = vmatmul.mubr.f32.gmra.mrb[0].mxu0 %v1997
    %v1999 = vpop.f32.mrb[0].mxu0
    %v2000 = vadd.f32 %v1811, %v1999
    %v2001 = vpop.f32.mrb[0].mxu0
    %2002 = vmatprep.mubr.f32.mxu0 0.0
    %v2003 = vand.u32 %v1252, 4294901760
    %v2004 = vsub.f32 %v1252, %v2003
    %v2005 = vand.u32 %v2004, 4294901760
    %2006 = vmatmul.mubr.f32.gmra.mrb[0].mxu0 %v2005
    %v2007 = vpop.f32.mrb[0].mxu0
    %v2008 = vadd.f32 %v1818, %v2007
    %v2009 = vpop.f32.mrb[0].mxu0
    %2010 = vmatprep.mubr.f32.mxu0 0.0
    %v2011 = vand.u32 %v1255, 4294901760
    %v2012 = vsub.f32 %v1255, %v2011
    %v2013 = vand.u32 %v2012, 4294901760
    %2014 = vmatmul.mubr.f32.gmra.mrb[0].mxu0 %v2013
    %v2015 = vpop.f32.mrb[0].mxu0
    %v2016 = vadd.f32 %v1825, %v2015
    %v2017 = vpop.f32.mrb[0].mxu0
    %2018 = vmatprep.mubr.f32.mxu0 0.0
    %v2019 = vand.u32 %v1258, 4294901760
    %v2020 = vsub.f32 %v1258, %v2019
    %v2021 = vand.u32 %v2020, 4294901760
    %2022 = vmatmul.mubr.f32.gmra.mrb[0].mxu0 %v2021
    %v2023 = vpop.f32.mrb[0].mxu0
    %v2024 = vadd.f32 %v1832, %v2023
    %v2025 = vpop.f32.mrb[0].mxu0
    %2026 = vmatprep.mubr.f32.mxu0 0.0
    %v2027 = vand.u32 %v1261, 4294901760
    %v2028 = vsub.f32 %v1261, %v2027
    %v2029 = vand.u32 %v2028, 4294901760
    %2030 = vmatmul.mubr.f32.gmra.mrb[0].mxu0 %v2029
    %v2031 = vpop.f32.mrb[0].mxu0
    %v2032 = vadd.f32 %v1839, %v2031
    %v2033 = vpop.f32.mrb[0].mxu0
    %2034 = vmatprep.mubr.f32.mxu0 0.0
    %v2035 = vand.u32 %v1264, 4294901760
    %v2036 = vsub.f32 %v1264, %v2035
    %v2037 = vand.u32 %v2036, 4294901760
    %2038 = vmatmul.mubr.f32.gmra.mrb[0].mxu0 %v2037
    %v2039 = vpop.f32.mrb[0].mxu0
    %v2040 = vadd.f32 %v1846, %v2039
    %v2041 = vpop.f32.mrb[0].mxu0
    %2042 = vmatprep.mubr.f32.mxu0 0.0
    %v2043 = vand.u32 %v1267, 4294901760
    %v2044 = vsub.f32 %v1267, %v2043
    %v2045 = vand.u32 %v2044, 4294901760
    %2046 = vmatmul.mubr.f32.gmra.mrb[0].mxu0 %v2045
    %v2047 = vpop.f32.mrb[0].mxu0
    %v2048 = vadd.f32 %v1853, %v2047
    %v2049 = vpop.f32.mrb[0].mxu0
    %2050 = vmatprep.mubr.f32.mxu0 0.0
    %v2051 = vand.u32 %v1270, 4294901760
    %v2052 = vsub.f32 %v1270, %v2051
    %v2053 = vand.u32 %v2052, 4294901760
    %2054 = vmatmul.mubr.f32.gmra.mrb[0].mxu0 %v2053
    %v2055 = vpop.f32.mrb[0].mxu0
    %v2056 = vadd.f32 %v1860, %v2055
    %v2057 = vpop.f32.mrb[0].mxu0
    %2058 = vmatprep.mubr.f32.mxu0 0.0
    %v2059 = vand.u32 %v1273, 4294901760
    %v2060 = vsub.f32 %v1273, %v2059
    %v2061 = vand.u32 %v2060, 4294901760
    %2062 = vmatmul.mubr.f32.gmra.mrb[0].mxu0 %v2061
    %v2063 = vpop.f32.mrb[0].mxu0
    %v2064 = vadd.f32 %v1867, %v2063
    %v2065 = vpop.f32.mrb[0].mxu0
    %2066 = vdwg.mxu0
    %2067 = vmatprep.subr.mxu0 0.0
    %v2068 = vand.u32 %v1215, 4294901760
    %v2069 = vsub.f32 %v1215, %v2068
    %v2070 = vand.u32 %v2069, 4294901760
    %2071 = vmatpush1.msra.mxu0 %v2070
    %2072 = vmatprep.subr.mxu0 0.0
    %v2073 = vand.u32 %v1216, 4294901760
    %v2074 = vsub.f32 %v1216, %v2073
    %v2075 = vand.u32 %v2074, 4294901760
    %2076 = vmatpush1.msra.mxu0 %v2075
    %2077 = vmatprep.subr.mxu0 0.0
    %v2078 = vand.u32 %v1217, 4294901760
    %v2079 = vsub.f32 %v1217, %v2078
    %v2080 = vand.u32 %v2079, 4294901760
    %2081 = vmatpush1.msra.mxu0 %v2080
    %2082 = vmatprep.subr.mxu0 0.0
    %v2083 = vand.u32 %v1218, 4294901760
    %v2084 = vsub.f32 %v1218, %v2083
    %v2085 = vand.u32 %v2084, 4294901760
    %2086 = vmatpush1.msra.mxu0 %v2085
    %2087 = vmatprep.subr.mxu0 0.0
    %2088 = vmatpush1.msra.mxu0 0.0
    %2089 = vmatprep.subr.mxu0 0.0
    %2090 = vmatpush1.msra.mxu0 0.0
    %2091 = vmatprep.subr.mxu0 0.0
    %2092 = vmatpush1.msra.mxu0 0.0
    %2093 = vmatprep.subr.mxu0 0.0
    %2094 = vmatpush1.msra.mxu0 0.0
    %2095 = vmatprep.subr.mxu0 0.0
    %2096 = vmatpush1.msra.mxu0 0.0
    %2097 = vmatprep.subr.mxu0 0.0
    %2098 = vmatpush1.msra.mxu0 0.0
    %2099 = vmatprep.subr.mxu0 0.0
    %2100 = vmatpush1.msra.mxu0 0.0
    %2101 = vmatprep.subr.mxu0 0.0
    %2102 = vmatpush1.msra.mxu0 0.0
    %2103 = vmatprep.subr.mxu0 0.0
    %2104 = vmatpush1.msra.mxu0 0.0
    %2105 = vmatprep.subr.mxu0 0.0
    %2106 = vmatpush1.msra.mxu0 0.0
    %2107 = vmatprep.subr.mxu0 0.0
    %2108 = vmatpush1.msra.mxu0 0.0
    %2109 = vmatprep.subr.mxu0 0.0
    %2110 = vmatpush1.msra.mxu0 0.0
    %2111 = vmatprep.subr.mxu0 0.0
    %2112 = vmatpush1.msra.mxu0 0.0
    %2113 = vmatprep.subr.mxu0 0.0
    %2114 = vmatpush1.msra.mxu0 0.0
    %2115 = vmatprep.subr.mxu0 0.0
    %2116 = vmatpush1.msra.mxu0 0.0
    %2117 = vmatprep.subr.mxu0 0.0
    %2118 = vmatpush1.msra.mxu0 0.0
    %2119 = vmatprep.subr.mxu0 0.0
    %2120 = vmatpush1.msra.mxu0 0.0
    %2121 = vmatprep.subr.mxu0 0.0
    %2122 = vmatpush1.msra.mxu0 0.0
    %2123 = vmatprep.subr.mxu0 0.0
    %2124 = vmatpush1.msra.mxu0 0.0
    %2125 = vmatprep.subr.mxu0 0.0
    %2126 = vmatpush1.msra.mxu0 0.0
    %2127 = vmatprep.subr.mxu0 0.0
    %2128 = vmatpush1.msra.mxu0 0.0
    %2129 = vmatprep.subr.mxu0 0.0
    %2130 = vmatpush1.msra.mxu0 0.0
    %2131 = vmatprep.subr.mxu0 0.0
    %2132 = vmatpush1.msra.mxu0 0.0
    %2133 = vmatprep.subr.mxu0 0.0
    %2134 = vmatpush1.msra.mxu0 0.0
    %2135 = vmatprep.subr.mxu0 0.0
    %2136 = vmatpush1.msra.mxu0 0.0
    %2137 = vmatprep.subr.mxu0 0.0
    %2138 = vmatpush1.msra.mxu0 0.0
    %2139 = vmatprep.subr.mxu0 0.0
    %2140 = vmatpush1.msra.mxu0 0.0
    %2141 = vmatprep.subr.mxu0 0.0
    %2142 = vmatpush1.msra.mxu0 0.0
    %2143 = vmatprep.mubr.f32.mxu0 0.0
    %v2144 = vand.u32 %v1228, 4294901760
    %2145 = vmatmul.mubr.f32.gmra.mrb[0].mxu0 %v2144
    %v2146 = vpop.f32.mrb[0].mxu0
    %v2147 = vadd.f32 %v1944, %v2146
    %v2148 = vpop.f32.mrb[0].mxu0
    %2149 = vmatprep.mubr.f32.mxu0 0.0
    %v2150 = vand.u32 %v1231, 4294901760
    %2151 = vmatmul.mubr.f32.gmra.mrb[0].mxu0 %v2150
    %v2152 = vpop.f32.mrb[0].mxu0
    %v2153 = vadd.f32 %v1952, %v2152
    %v2154 = vpop.f32.mrb[0].mxu0
    %2155 = vmatprep.mubr.f32.mxu0 0.0
    %v2156 = vand.u32 %v1234, 4294901760
    %2157 = vmatmul.mubr.f32.gmra.mrb[0].mxu0 %v2156
    %v2158 = vpop.f32.mrb[0].mxu0
    %v2159 = vadd.f32 %v1960, %v2158
    %v2160 = vpop.f32.mrb[0].mxu0
    %2161 = vmatprep.mubr.f32.mxu0 0.0
    %v2162 = vand.u32 %v1237, 4294901760
    %2163 = vmatmul.mubr.f32.gmra.mrb[0].mxu0 %v2162
    %v2164 = vpop.f32.mrb[0].mxu0
    %v2165 = vadd.f32 %v1968, %v2164
    %v2166 = vpop.f32.mrb[0].mxu0
    %2167 = vmatprep.mubr.f32.mxu0 0.0
    %v2168 = vand.u32 %v1240, 4294901760
    %2169 = vmatmul.mubr.f32.gmra.mrb[0].mxu0 %v2168
    %v2170 = vpop.f32.mrb[0].mxu0
    %v2171 = vadd.f32 %v1976, %v2170
    %v2172 = vpop.f32.mrb[0].mxu0
    %2173 = vmatprep.mubr.f32.mxu0 0.0
    %v2174 = vand.u32 %v1243, 4294901760
    %2175 = vmatmul.mubr.f32.gmra.mrb[0].mxu0 %v2174
    %v2176 = vpop.f32.mrb[0].mxu0
    %v2177 = vadd.f32 %v1984, %v2176
    %v2178 = vpop.f32.mrb[0].mxu0
    %2179 = vmatprep.mubr.f32.mxu0 0.0
    %v2180 = vand.u32 %v1246, 4294901760
    %2181 = vmatmul.mubr.f32.gmra.mrb[0].mxu0 %v2180
    %v2182 = vpop.f32.mrb[0].mxu0
    %v2183 = vadd.f32 %v1992, %v2182
    %v2184 = vpop.f32.mrb[0].mxu0
    %2185 = vmatprep.mubr.f32.mxu0 0.0
    %v2186 = vand.u32 %v1249, 4294901760
    %2187 = vmatmul.mubr.f32.gmra.mrb[0].mxu0 %v2186
    %v2188 = vpop.f32.mrb[0].mxu0
    %v2189 = vadd.f32 %v2000, %v2188
    %v2190 = vpop.f32.mrb[0].mxu0
    %2191 = vmatprep.mubr.f32.mxu0 0.0
    %v2192 = vand.u32 %v1252, 4294901760
    %2193 = vmatmul.mubr.f32.gmra.mrb[0].mxu0 %v2192
    %v2194 = vpop.f32.mrb[0].mxu0
    %v2195 = vadd.f32 %v2008, %v2194
    %v2196 = vpop.f32.mrb[0].mxu0
    %2197 = vmatprep.mubr.f32.mxu0 0.0
    %v2198 = vand.u32 %v1255, 4294901760
    %2199 = vmatmul.mubr.f32.gmra.mrb[0].mxu0 %v2198
    %v2200 = vpop.f32.mrb[0].mxu0
    %v2201 = vadd.f32 %v2016, %v2200
    %v2202 = vpop.f32.mrb[0].mxu0
    %2203 = vmatprep.mubr.f32.mxu0 0.0
    %v2204 = vand.u32 %v1258, 4294901760
    %2205 = vmatmul.mubr.f32.gmra.mrb[0].mxu0 %v2204
    %v2206 = vpop.f32.mrb[0].mxu0
    %v2207 = vadd.f32 %v2024, %v2206
    %v2208 = vpop.f32.mrb[0].mxu0
    %2209 = vmatprep.mubr.f32.mxu0 0.0
    %v2210 = vand.u32 %v1261, 4294901760
    %2211 = vmatmul.mubr.f32.gmra.mrb[0].mxu0 %v2210
    %v2212 = vpop.f32.mrb[0].mxu0
    %v2213 = vadd.f32 %v2032, %v2212
    %v2214 = vpop.f32.mrb[0].mxu0
    %2215 = vmatprep.mubr.f32.mxu0 0.0
    %v2216 = vand.u32 %v1264, 4294901760
    %2217 = vmatmul.mubr.f32.gmra.mrb[0].mxu0 %v2216
    %v2218 = vpop.f32.mrb[0].mxu0
    %v2219 = vadd.f32 %v2040, %v2218
    %v2220 = vpop.f32.mrb[0].mxu0
    %2221 = vmatprep.mubr.f32.mxu0 0.0
    %v2222 = vand.u32 %v1267, 4294901760
    %2223 = vmatmul.mubr.f32.gmra.mrb[0].mxu0 %v2222
    %v2224 = vpop.f32.mrb[0].mxu0
    %v2225 = vadd.f32 %v2048, %v2224
    %v2226 = vpop.f32.mrb[0].mxu0
    %2227 = vmatprep.mubr.f32.mxu0 0.0
    %v2228 = vand.u32 %v1270, 4294901760
    %2229 = vmatmul.mubr.f32.gmra.mrb[0].mxu0 %v2228
    %v2230 = vpop.f32.mrb[0].mxu0
    %v2231 = vadd.f32 %v2056, %v2230
    %v2232 = vpop.f32.mrb[0].mxu0
    %2233 = vmatprep.mubr.f32.mxu0 0.0
    %v2234 = vand.u32 %v1273, 4294901760
    %2235 = vmatmul.mubr.f32.gmra.mrb[0].mxu0 %v2234
    %v2236 = vpop.f32.mrb[0].mxu0
    %v2237 = vadd.f32 %v2064, %v2236
    %v2238 = vpop.f32.mrb[0].mxu0
    %2239 = vdwg.mxu0
    %2240 = vmatprep.subr.mxu0 0.0
    %v2241 = vand.u32 %v1215, 4294901760
    %2242 = vmatpush1.msra.mxu0 %v2241
    %2243 = vmatprep.subr.mxu0 0.0
    %v2244 = vand.u32 %v1216, 4294901760
    %2245 = vmatpush1.msra.mxu0 %v2244
    %2246 = vmatprep.subr.mxu0 0.0
    %v2247 = vand.u32 %v1217, 4294901760
    %2248 = vmatpush1.msra.mxu0 %v2247
    %2249 = vmatprep.subr.mxu0 0.0
    %v2250 = vand.u32 %v1218, 4294901760
    %2251 = vmatpush1.msra.mxu0 %v2250
    %2252 = vmatprep.subr.mxu0 0.0
    %2253 = vmatpush1.msra.mxu0 0.0
    %2254 = vmatprep.subr.mxu0 0.0
    %2255 = vmatpush1.msra.mxu0 0.0
    %2256 = vmatprep.subr.mxu0 0.0
    %2257 = vmatpush1.msra.mxu0 0.0
    %2258 = vmatprep.subr.mxu0 0.0
    %2259 = vmatpush1.msra.mxu0 0.0
    %2260 = vmatprep.subr.mxu0 0.0
    %2261 = vmatpush1.msra.mxu0 0.0
    %2262 = vmatprep.subr.mxu0 0.0
    %2263 = vmatpush1.msra.mxu0 0.0
    %2264 = vmatprep.subr.mxu0 0.0
    %2265 = vmatpush1.msra.mxu0 0.0
    %2266 = vmatprep.subr.mxu0 0.0
    %2267 = vmatpush1.msra.mxu0 0.0
    %2268 = vmatprep.subr.mxu0 0.0
    %2269 = vmatpush1.msra.mxu0 0.0
    %2270 = vmatprep.subr.mxu0 0.0
    %2271 = vmatpush1.msra.mxu0 0.0
    %2272 = vmatprep.subr.mxu0 0.0
    %2273 = vmatpush1.msra.mxu0 0.0
    %2274 = vmatprep.subr.mxu0 0.0
    %2275 = vmatpush1.msra.mxu0 0.0
    %2276 = vmatprep.subr.mxu0 0.0
    %2277 = vmatpush1.msra.mxu0 0.0
    %2278 = vmatprep.subr.mxu0 0.0
    %2279 = vmatpush1.msra.mxu0 0.0
    %2280 = vmatprep.subr.mxu0 0.0
    %2281 = vmatpush1.msra.mxu0 0.0
    %2282 = vmatprep.subr.mxu0 0.0
    %2283 = vmatpush1.msra.mxu0 0.0
    %2284 = vmatprep.subr.mxu0 0.0
    %2285 = vmatpush1.msra.mxu0 0.0
    %2286 = vmatprep.subr.mxu0 0.0
    %2287 = vmatpush1.msra.mxu0 0.0
    %2288 = vmatprep.subr.mxu0 0.0
    %2289 = vmatpush1.msra.mxu0 0.0
    %2290 = vmatprep.subr.mxu0 0.0
    %2291 = vmatpush1.msra.mxu0 0.0
    %2292 = vmatprep.subr.mxu0 0.0
    %2293 = vmatpush1.msra.mxu0 0.0
    %2294 = vmatprep.subr.mxu0 0.0
    %2295 = vmatpush1.msra.mxu0 0.0
    %2296 = vmatprep.subr.mxu0 0.0
    %2297 = vmatpush1.msra.mxu0 0.0
    %2298 = vmatprep.subr.mxu0 0.0
    %2299 = vmatpush1.msra.mxu0 0.0
    %2300 = vmatprep.subr.mxu0 0.0
    %2301 = vmatpush1.msra.mxu0 0.0
    %2302 = vmatprep.subr.mxu0 0.0
    %2303 = vmatpush1.msra.mxu0 0.0
    %2304 = vmatprep.subr.mxu0 0.0
    %2305 = vmatpush1.msra.mxu0 0.0
    %2306 = vmatprep.subr.mxu0 0.0
    %2307 = vmatpush1.msra.mxu0 0.0
    %2308 = vmatprep.mubr.f32.mxu0 0.0
    %v2309 = vand.u32 %v1228, 4294901760
    %2310 = vmatmul.mubr.f32.gmra.mrb[0].mxu0 %v2309
    %v2311 = vpop.f32.mrb[0].mxu0
    %v2312 = vadd.f32 %v2147, %v2311
    %v2313 = vpop.f32.mrb[0].mxu0
    %2314 = vmatprep.mubr.f32.mxu0 0.0
    %v2315 = vand.u32 %v1231, 4294901760
    %2316 = vmatmul.mubr.f32.gmra.mrb[0].mxu0 %v2315
    %v2317 = vpop.f32.mrb[0].mxu0
    %v2318 = vadd.f32 %v2153, %v2317
    %v2319 = vpop.f32.mrb[0].mxu0
    %2320 = vmatprep.mubr.f32.mxu0 0.0
    %v2321 = vand.u32 %v1234, 4294901760
    %2322 = vmatmul.mubr.f32.gmra.mrb[0].mxu0 %v2321
    %v2323 = vpop.f32.mrb[0].mxu0
    %v2324 = vadd.f32 %v2159, %v2323
    %v2325 = vpop.f32.mrb[0].mxu0
    %2326 = vmatprep.mubr.f32.mxu0 0.0
    %v2327 = vand.u32 %v1237, 4294901760
    %2328 = vmatmul.mubr.f32.gmra.mrb[0].mxu0 %v2327
    %v2329 = vpop.f32.mrb[0].mxu0
    %v2330 = vadd.f32 %v2165, %v2329
    %v2331 = vpop.f32.mrb[0].mxu0
    %2332 = vmatprep.mubr.f32.mxu0 0.0
    %v2333 = vand.u32 %v1240, 4294901760
    %2334 = vmatmul.mubr.f32.gmra.mrb[0].mxu0 %v2333
    %v2335 = vpop.f32.mrb[0].mxu0
    %v2336 = vadd.f32 %v2171, %v2335
    %v2337 = vpop.f32.mrb[0].mxu0
    %2338 = vmatprep.mubr.f32.mxu0 0.0
    %v2339 = vand.u32 %v1243, 4294901760
    %2340 = vmatmul.mubr.f32.gmra.mrb[0].mxu0 %v2339
    %v2341 = vpop.f32.mrb[0].mxu0
    %v2342 = vadd.f32 %v2177, %v2341
    %v2343 = vpop.f32.mrb[0].mxu0
    %2344 = vmatprep.mubr.f32.mxu0 0.0
    %v2345 = vand.u32 %v1246, 4294901760
    %2346 = vmatmul.mubr.f32.gmra.mrb[0].mxu0 %v2345
    %v2347 = vpop.f32.mrb[0].mxu0
    %v2348 = vadd.f32 %v2183, %v2347
    %v2349 = vpop.f32.mrb[0].mxu0
    %2350 = vmatprep.mubr.f32.mxu0 0.0
    %v2351 = vand.u32 %v1249, 4294901760
    %2352 = vmatmul.mubr.f32.gmra.mrb[0].mxu0 %v2351
    %v2353 = vpop.f32.mrb[0].mxu0
    %v2354 = vadd.f32 %v2189, %v2353
    %v2355 = vpop.f32.mrb[0].mxu0
    %2356 = vmatprep.mubr.f32.mxu0 0.0
    %v2357 = vand.u32 %v1252, 4294901760
    %2358 = vmatmul.mubr.f32.gmra.mrb[0].mxu0 %v2357
    %v2359 = vpop.f32.mrb[0].mxu0
    %v2360 = vadd.f32 %v2195, %v2359
    %v2361 = vpop.f32.mrb[0].mxu0
    %2362 = vmatprep.mubr.f32.mxu0 0.0
    %v2363 = vand.u32 %v1255, 4294901760
    %2364 = vmatmul.mubr.f32.gmra.mrb[0].mxu0 %v2363
    %v2365 = vpop.f32.mrb[0].mxu0
    %v2366 = vadd.f32 %v2201, %v2365
    %v2367 = vpop.f32.mrb[0].mxu0
    %2368 = vmatprep.mubr.f32.mxu0 0.0
    %v2369 = vand.u32 %v1258, 4294901760
    %2370 = vmatmul.mubr.f32.gmra.mrb[0].mxu0 %v2369
    %v2371 = vpop.f32.mrb[0].mxu0
    %v2372 = vadd.f32 %v2207, %v2371
    %v2373 = vpop.f32.mrb[0].mxu0
    %2374 = vmatprep.mubr.f32.mxu0 0.0
    %v2375 = vand.u32 %v1261, 4294901760
    %2376 = vmatmul.mubr.f32.gmra.mrb[0].mxu0 %v2375
    %v2377 = vpop.f32.mrb[0].mxu0
    %v2378 = vadd.f32 %v2213, %v2377
    %v2379 = vpop.f32.mrb[0].mxu0
    %2380 = vmatprep.mubr.f32.mxu0 0.0
    %v2381 = vand.u32 %v1264, 4294901760
    %2382 = vmatmul.mubr.f32.gmra.mrb[0].mxu0 %v2381
    %v2383 = vpop.f32.mrb[0].mxu0
    %v2384 = vadd.f32 %v2219, %v2383
    %v2385 = vpop.f32.mrb[0].mxu0
    %2386 = vmatprep.mubr.f32.mxu0 0.0
    %v2387 = vand.u32 %v1267, 4294901760
    %2388 = vmatmul.mubr.f32.gmra.mrb[0].mxu0 %v2387
    %v2389 = vpop.f32.mrb[0].mxu0
    %v2390 = vadd.f32 %v2225, %v2389
    %v2391 = vpop.f32.mrb[0].mxu0
    %2392 = vmatprep.mubr.f32.mxu0 0.0
    %v2393 = vand.u32 %v1270, 4294901760
    %2394 = vmatmul.mubr.f32.gmra.mrb[0].mxu0 %v2393
    %v2395 = vpop.f32.mrb[0].mxu0
    %v2396 = vadd.f32 %v2231, %v2395
    %v2397 = vpop.f32.mrb[0].mxu0
    %2398 = vmatprep.mubr.f32.mxu0 0.0
    %v2399 = vand.u32 %v1273, 4294901760
    %2400 = vmatmul.mubr.f32.gmra.mrb[0].mxu0 %v2399
    %v2401 = vpop.f32.mrb[0].mxu0
    %v2402 = vadd.f32 %v2237, %v2401
    %v2403 = vpop.f32.mrb[0].mxu0
    %2404 = vdwg.mxu0
    %vm2405 = vcmask 64512
    %v2406 = vsel %vm2405, %v2312, -inf
    %2407 = vmax.xlane.f32.xlu0 %v2406
    %v2408 = vpop.xlane.xlu0 %2407
    %v2409 = vsel %vm2405, %v2318, -inf
    %2410 = vmax.xlane.f32.xlu0 %v2409
    %v2411 = vpop.xlane.xlu0 %2410
    %v2412 = vsel %vm2405, %v2324, -inf
    %2413 = vmax.xlane.f32.xlu0 %v2412
    %v2414 = vpop.xlane.xlu0 %2413
    %v2415 = vsel %vm2405, %v2330, -inf
    %2416 = vmax.xlane.f32.xlu0 %v2415
    %v2417 = vpop.xlane.xlu0 %2416
    %v2418 = vsel %vm2405, %v2336, -inf
    %2419 = vmax.xlane.f32.xlu0 %v2418
    %v2420 = vpop.xlane.xlu0 %2419
    %v2421 = vsel %vm2405, %v2342, -inf
    %2422 = vmax.xlane.f32.xlu0 %v2421
    %v2423 = vpop.xlane.xlu0 %2422
    %v2424 = vsel %vm2405, %v2348, -inf
    %2425 = vmax.xlane.f32.xlu0 %v2424
    %v2426 = vpop.xlane.xlu0 %2425
    %v2427 = vsel %vm2405, %v2354, -inf
    %2428 = vmax.xlane.f32.xlu0 %v2427
    %v2429 = vpop.xlane.xlu0 %2428
    %v2430 = vsel %vm2405, %v2360, -inf
    %2431 = vmax.xlane.f32.xlu0 %v2430
    %v2432 = vpop.xlane.xlu0 %2431
    %v2433 = vsel %vm2405, %v2366, -inf
    %2434 = vmax.xlane.f32.xlu0 %v2433
    %v2435 = vpop.xlane.xlu0 %2434
    %v2436 = vsel %vm2405, %v2372, -inf
    %2437 = vmax.xlane.f32.xlu0 %v2436
    %v2438 = vpop.xlane.xlu0 %2437
    %v2439 = vsel %vm2405, %v2378, -inf
    %2440 = vmax.xlane.f32.xlu0 %v2439
    %v2441 = vpop.xlane.xlu0 %2440
    %v2442 = vsel %vm2405, %v2384, -inf
    %2443 = vmax.xlane.f32.xlu0 %v2442
    %v2444 = vpop.xlane.xlu0 %2443
    %v2445 = vsel %vm2405, %v2390, -inf
    %2446 = vmax.xlane.f32.xlu0 %v2445
    %v2447 = vpop.xlane.xlu0 %2446
    %v2448 = vsel %vm2405, %v2396, -inf
    %2449 = vmax.xlane.f32.xlu0 %v2448
    %v2450 = vpop.xlane.xlu0 %2449
    %v2451 = vsel %vm2405, %v2402, -inf
    %2452 = vmax.xlane.f32.xlu0 %v2451
    %v2453 = vpop.xlane.xlu0 %2452
    %v2454 = vsub.f32 %v2312, %v2408
    %v2455 = vsub.f32 %v2318, %v2411
    %v2456 = vsub.f32 %v2324, %v2414
    %v2457 = vsub.f32 %v2330, %v2417
    %v2458 = vsub.f32 %v2336, %v2420
    %v2459 = vsub.f32 %v2342, %v2423
    %v2460 = vsub.f32 %v2348, %v2426
    %v2461 = vsub.f32 %v2354, %v2429
    %v2462 = vsub.f32 %v2360, %v2432
    %v2463 = vsub.f32 %v2366, %v2435
    %v2464 = vsub.f32 %v2372, %v2438
    %v2465 = vsub.f32 %v2378, %v2441
    %v2466 = vsub.f32 %v2384, %v2444
    %v2467 = vsub.f32 %v2390, %v2447
    %v2468 = vsub.f32 %v2396, %v2450
    %v2469 = vsub.f32 %v2402, %v2453
    %v2470 = vmul.f32 %v2454, 1.442695
    %v2471 = vpow.pop %v2470
    %v2472 = vmul.f32 %v2455, 1.442695
    %v2473 = vpow.pop %v2472
    %v2474 = vmul.f32 %v2456, 1.442695
    %v2475 = vpow.pop %v2474
    %v2476 = vmul.f32 %v2457, 1.442695
    %v2477 = vpow.pop %v2476
    %v2478 = vmul.f32 %v2458, 1.442695
    %v2479 = vpow.pop %v2478
    %v2480 = vmul.f32 %v2459, 1.442695
    %v2481 = vpow.pop %v2480
    %v2482 = vmul.f32 %v2460, 1.442695
    %v2483 = vpow.pop %v2482
    %v2484 = vmul.f32 %v2461, 1.442695
    %v2485 = vpow.pop %v2484
    %v2486 = vmul.f32 %v2462, 1.442695
    %v2487 = vpow.pop %v2486
    %v2488 = vmul.f32 %v2463, 1.442695
    %v2489 = vpow.pop %v2488
    %v2490 = vmul.f32 %v2464, 1.442695
    %v2491 = vpow.pop %v2490
    %v2492 = vmul.f32 %v2465, 1.442695
    %v2493 = vpow.pop %v2492
    %v2494 = vmul.f32 %v2466, 1.442695
    %v2495 = vpow.pop %v2494
    %v2496 = vmul.f32 %v2467, 1.442695
    %v2497 = vpow.pop %v2496
    %v2498 = vmul.f32 %v2468, 1.442695
    %v2499 = vpow.pop %v2498
    %v2500 = vmul.f32 %v2469, 1.442695
    %v2501 = vpow.pop %v2500
    %v2502 = vsel %vm2405, %v2471, 0.0
    %2503 = vadd.xlane.f32.xlu0 %v2502
    %v2504 = vpop.xlane.xlu0 %2503
    %v2505 = vsel %vm2405, %v2473, 0.0
    %2506 = vadd.xlane.f32.xlu0 %v2505
    %v2507 = vpop.xlane.xlu0 %2506
    %v2508 = vsel %vm2405, %v2475, 0.0
    %2509 = vadd.xlane.f32.xlu0 %v2508
    %v2510 = vpop.xlane.xlu0 %2509
    %v2511 = vsel %vm2405, %v2477, 0.0
    %2512 = vadd.xlane.f32.xlu0 %v2511
    %v2513 = vpop.xlane.xlu0 %2512
    %v2514 = vsel %vm2405, %v2479, 0.0
    %2515 = vadd.xlane.f32.xlu0 %v2514
    %v2516 = vpop.xlane.xlu0 %2515
    %v2517 = vsel %vm2405, %v2481, 0.0
    %2518 = vadd.xlane.f32.xlu0 %v2517
    %v2519 = vpop.xlane.xlu0 %2518
    %v2520 = vsel %vm2405, %v2483, 0.0
    %2521 = vadd.xlane.f32.xlu0 %v2520
    %v2522 = vpop.xlane.xlu0 %2521
    %v2523 = vsel %vm2405, %v2485, 0.0
    %2524 = vadd.xlane.f32.xlu0 %v2523
    %v2525 = vpop.xlane.xlu0 %2524
    %v2526 = vsel %vm2405, %v2487, 0.0
    %2527 = vadd.xlane.f32.xlu0 %v2526
    %v2528 = vpop.xlane.xlu0 %2527
    %v2529 = vsel %vm2405, %v2489, 0.0
    %2530 = vadd.xlane.f32.xlu0 %v2529
    %v2531 = vpop.xlane.xlu0 %2530
    %v2532 = vsel %vm2405, %v2491, 0.0
    %2533 = vadd.xlane.f32.xlu0 %v2532
    %v2534 = vpop.xlane.xlu0 %2533
    %v2535 = vsel %vm2405, %v2493, 0.0
    %2536 = vadd.xlane.f32.xlu0 %v2535
    %v2537 = vpop.xlane.xlu0 %2536
    %v2538 = vsel %vm2405, %v2495, 0.0
    %2539 = vadd.xlane.f32.xlu0 %v2538
    %v2540 = vpop.xlane.xlu0 %2539
    %v2541 = vsel %vm2405, %v2497, 0.0
    %2542 = vadd.xlane.f32.xlu0 %v2541
    %v2543 = vpop.xlane.xlu0 %2542
    %v2544 = vsel %vm2405, %v2499, 0.0
    %2545 = vadd.xlane.f32.xlu0 %v2544
    %v2546 = vpop.xlane.xlu0 %2545
    %v2547 = vsel %vm2405, %v2501, 0.0
    %2548 = vadd.xlane.f32.xlu0 %v2547
    %v2549 = vpop.xlane.xlu0 %2548
    %v2550 = vlog2.pop %v2504
    %v2551 = vmul.f32 %v2550, 0.6931472
    %v2552 = vlog2.pop %v2507
    %v2553 = vmul.f32 %v2552, 0.6931472
    %v2554 = vlog2.pop %v2510
    %v2555 = vmul.f32 %v2554, 0.6931472
    %v2556 = vlog2.pop %v2513
    %v2557 = vmul.f32 %v2556, 0.6931472
    %v2558 = vlog2.pop %v2516
    %v2559 = vmul.f32 %v2558, 0.6931472
    %v2560 = vlog2.pop %v2519
    %v2561 = vmul.f32 %v2560, 0.6931472
    %v2562 = vlog2.pop %v2522
    %v2563 = vmul.f32 %v2562, 0.6931472
    %v2564 = vlog2.pop %v2525
    %v2565 = vmul.f32 %v2564, 0.6931472
    %v2566 = vlog2.pop %v2528
    %v2567 = vmul.f32 %v2566, 0.6931472
    %v2568 = vlog2.pop %v2531
    %v2569 = vmul.f32 %v2568, 0.6931472
    %v2570 = vlog2.pop %v2534
    %v2571 = vmul.f32 %v2570, 0.6931472
    %v2572 = vlog2.pop %v2537
    %v2573 = vmul.f32 %v2572, 0.6931472
    %v2574 = vlog2.pop %v2540
    %v2575 = vmul.f32 %v2574, 0.6931472
    %v2576 = vlog2.pop %v2543
    %v2577 = vmul.f32 %v2576, 0.6931472
    %v2578 = vlog2.pop %v2546
    %v2579 = vmul.f32 %v2578, 0.6931472
    %v2580 = vlog2.pop %v2549
    %v2581 = vmul.f32 %v2580, 0.6931472
    %v2582 = vsub.f32 %v2454, %v2551
    %v2583 = vsub.f32 %v2455, %v2553
    %v2584 = vsub.f32 %v2456, %v2555
    %v2585 = vsub.f32 %v2457, %v2557
    %v2586 = vsub.f32 %v2458, %v2559
    %v2587 = vsub.f32 %v2459, %v2561
    %v2588 = vsub.f32 %v2460, %v2563
    %v2589 = vsub.f32 %v2461, %v2565
    %v2590 = vsub.f32 %v2462, %v2567
    %v2591 = vsub.f32 %v2463, %v2569
    %v2592 = vsub.f32 %v2464, %v2571
    %v2593 = vsub.f32 %v2465, %v2573
    %v2594 = vsub.f32 %v2466, %v2575
    %v2595 = vsub.f32 %v2467, %v2577
    %v2596 = vsub.f32 %v2468, %v2579
    %v2597 = vsub.f32 %v2469, %v2581
    %2598 = vst.msk [vmem:[#allocation2] sm:$0xff] %vm2405, %v2582
    %2599 = vst.msk [vmem:[#allocation2 + $0x8] sm:$0xff] %vm2405, %v2583
    %2600 = vst.msk [vmem:[#allocation2 + $0x10] sm:$0xff] %vm2405, %v2584
    %2601 = vst.msk [vmem:[#allocation2 + $0x18] sm:$0xff] %vm2405, %v2585
    %2602 = vst.msk [vmem:[#allocation2 + $0x20] sm:$0xff] %vm2405, %v2586
    %2603 = vst.msk [vmem:[#allocation2 + $0x28] sm:$0xff] %vm2405, %v2587
    %2604 = vst.msk [vmem:[#allocation2 + $0x30] sm:$0xff] %vm2405, %v2588
    %2605 = vst.msk [vmem:[#allocation2 + $0x38] sm:$0xff] %vm2405, %v2589
    %2606 = vst.msk [vmem:[#allocation2 + $0x40] sm:$0xff] %vm2405, %v2590
    %2607 = vst.msk [vmem:[#allocation2 + $0x48] sm:$0xff] %vm2405, %v2591
    %2608 = vst.msk [vmem:[#allocation2 + $0x50] sm:$0xff] %vm2405, %v2592
    %2609 = vst.msk [vmem:[#allocation2 + $0x58] sm:$0xff] %vm2405, %v2593
    %2610 = vst.msk [vmem:[#allocation2 + $0x60] sm:$0xff] %vm2405, %v2594
    %2611 = vst.msk [vmem:[#allocation2 + $0x68] sm:$0xff] %vm2405, %v2595
    %2612 = vst.msk [vmem:[#allocation2 + $0x70] sm:$0xff] %vm2405, %v2596
    %2613 = vst.msk [vmem:[#allocation2 + $0x78] sm:$0xff] %vm2405, %v2597
    %v2614 = vld [vmem:[#allocation2] ss:$16 sm:$0x3]
    %v2615 = vld [vmem:[#allocation2] ss:$16 sm:$0xc]
    %v2616 = vor.u32 %v2614, %v2615
    %v2617 = vld [vmem:[#allocation2] ss:$16 sm:$0x30]
    %v2618 = vor.u32 %v2616, %v2617
    %v2619 = vld [vmem:[#allocation2] ss:$16 sm:$0xc0]
    %v2620 = vor.u32 %v2618, %v2619
    %2621 = vst.msk [vmem:[#allocation3] sm:$0xff] %vm2405, %v2620
    %s2622 = scalar_lea.vmem [#allocation2], 1
    %v2623 = vld [vmem:[%s2622] ss:$16 sm:$0x3]
    %v2624 = vld [vmem:[%s2622] ss:$16 sm:$0xc]
    %v2625 = vor.u32 %v2623, %v2624
    %v2626 = vld [vmem:[%s2622] ss:$16 sm:$0x30]
    %v2627 = vor.u32 %v2625, %v2626
    %v2628 = vld [vmem:[%s2622] ss:$16 sm:$0xc0]
    %v2629 = vor.u32 %v2627, %v2628
    %2631 = vrot.lane.b32.xlu0 %v2629, 8
    %v2632 = vpop.permute.xlu0 %2631
    %vm2634 = vcmask 130112
    %2635 = vst.msk [vmem:[#allocation3] sm:$0xff] %vm2634, %v2632
    %s2636 = scalar_lea.vmem [#allocation2], 2
    %v2637 = vld [vmem:[%s2636] ss:$16 sm:$0x3]
    %v2638 = vld [vmem:[%s2636] ss:$16 sm:$0xc]
    %v2639 = vor.u32 %v2637, %v2638
    %v2640 = vld [vmem:[%s2636] ss:$16 sm:$0x30]
    %v2641 = vor.u32 %v2639, %v2640
    %v2642 = vld [vmem:[%s2636] ss:$16 sm:$0xc0]
    %v2643 = vor.u32 %v2641, %v2642
    %2645 = vrot.lane.b32.xlu0 %v2643, 16
    %v2646 = vpop.permute.xlu0 %2645
    %vm2648 = vcmask 195712
    %2649 = vst.msk [vmem:[#allocation3] sm:$0xff] %vm2648, %v2646
    %s2650 = scalar_lea.vmem [#allocation2], 3
    %v2651 = vld [vmem:[%s2650] ss:$16 sm:$0x3]
    %v2652 = vld [vmem:[%s2650] ss:$16 sm:$0xc]
    %v2653 = vor.u32 %v2651, %v2652
    %v2654 = vld [vmem:[%s2650] ss:$16 sm:$0x30]
    %v2655 = vor.u32 %v2653, %v2654
    %v2656 = vld [vmem:[%s2650] ss:$16 sm:$0xc0]
    %v2657 = vor.u32 %v2655, %v2656
    %2659 = vrot.lane.b32.xlu0 %v2657, 24
    %v2660 = vpop.permute.xlu0 %2659
    %vm2662 = vcmask 261312
    %2663 = vst.msk [vmem:[#allocation3] sm:$0xff] %vm2662, %v2660
    %s2664 = scalar_lea.vmem [#allocation2], 4
    %v2665 = vld [vmem:[%s2664] ss:$16 sm:$0x3]
    %v2666 = vld [vmem:[%s2664] ss:$16 sm:$0xc]
    %v2667 = vor.u32 %v2665, %v2666
    %v2668 = vld [vmem:[%s2664] ss:$16 sm:$0x30]
    %v2669 = vor.u32 %v2667, %v2668
    %v2670 = vld [vmem:[%s2664] ss:$16 sm:$0xc0]
    %v2671 = vor.u32 %v2669, %v2670
    %2673 = vrot.lane.b32.xlu0 %v2671, 32
    %v2674 = vpop.permute.xlu0 %2673
    %vm2676 = vcmask 326912
    %2677 = vst.msk [vmem:[#allocation3] sm:$0xff] %vm2676, %v2674
    %s2678 = scalar_lea.vmem [#allocation2], 5
    %v2679 = vld [vmem:[%s2678] ss:$16 sm:$0x3]
    %v2680 = vld [vmem:[%s2678] ss:$16 sm:$0xc]
    %v2681 = vor.u32 %v2679, %v2680
    %v2682 = vld [vmem:[%s2678] ss:$16 sm:$0x30]
    %v2683 = vor.u32 %v2681, %v2682
    %v2684 = vld [vmem:[%s2678] ss:$16 sm:$0xc0]
    %v2685 = vor.u32 %v2683, %v2684
    %2687 = vrot.lane.b32.xlu0 %v2685, 40
    %v2688 = vpop.permute.xlu0 %2687
    %vm2690 = vcmask 392512
    %2691 = vst.msk [vmem:[#allocation3] sm:$0xff] %vm2690, %v2688
    %s2692 = scalar_lea.vmem [#allocation2], 6
    %v2693 = vld [vmem:[%s2692] ss:$16 sm:$0x3]
    %v2694 = vld [vmem:[%s2692] ss:$16 sm:$0xc]
    %v2695 = vor.u32 %v2693, %v2694
    %v2696 = vld [vmem:[%s2692] ss:$16 sm:$0x30]
    %v2697 = vor.u32 %v2695, %v2696
    %v2698 = vld [vmem:[%s2692] ss:$16 sm:$0xc0]
    %v2699 = vor.u32 %v2697, %v2698
    %2701 = vrot.lane.b32.xlu0 %v2699, 48
    %v2702 = vpop.permute.xlu0 %2701
    %vm2704 = vcmask 458112
    %2705 = vst.msk [vmem:[#allocation3] sm:$0xff] %vm2704, %v2702
    %s2706 = scalar_lea.vmem [#allocation2], 7
    %v2707 = vld [vmem:[%s2706] ss:$16 sm:$0x3]
    %v2708 = vld [vmem:[%s2706] ss:$16 sm:$0xc]
    %v2709 = vor.u32 %v2707, %v2708
    %v2710 = vld [vmem:[%s2706] ss:$16 sm:$0x30]
    %v2711 = vor.u32 %v2709, %v2710
    %v2712 = vld [vmem:[%s2706] ss:$16 sm:$0xc0]
    %v2713 = vor.u32 %v2711, %v2712
    %2715 = vrot.lane.b32.xlu0 %v2713, 56
    %v2716 = vpop.permute.xlu0 %2715
    %vm2718 = vcmask 523712
    %2719 = vst.msk [vmem:[#allocation3] sm:$0xff] %vm2718, %v2716
    %s2720 = scalar_lea.vmem [#allocation2], 8
    %v2721 = vld [vmem:[%s2720] ss:$16 sm:$0x3]
    %v2722 = vld [vmem:[%s2720] ss:$16 sm:$0xc]
    %v2723 = vor.u32 %v2721, %v2722
    %v2724 = vld [vmem:[%s2720] ss:$16 sm:$0x30]
    %v2725 = vor.u32 %v2723, %v2724
    %v2726 = vld [vmem:[%s2720] ss:$16 sm:$0xc0]
    %v2727 = vor.u32 %v2725, %v2726
    %2729 = vrot.lane.b32.xlu0 %v2727, 64
    %v2730 = vpop.permute.xlu0 %2729
    %vm2732 = vcmask 589312
    %2733 = vst.msk [vmem:[#allocation3] sm:$0xff] %vm2732, %v2730
    %s2734 = scalar_lea.vmem [#allocation2], 9
    %v2735 = vld [vmem:[%s2734] ss:$16 sm:$0x3]
    %v2736 = vld [vmem:[%s2734] ss:$16 sm:$0xc]
    %v2737 = vor.u32 %v2735, %v2736
    %v2738 = vld [vmem:[%s2734] ss:$16 sm:$0x30]
    %v2739 = vor.u32 %v2737, %v2738
    %v2740 = vld [vmem:[%s2734] ss:$16 sm:$0xc0]
    %v2741 = vor.u32 %v2739, %v2740
    %2743 = vrot.lane.b32.xlu0 %v2741, 72
    %v2744 = vpop.permute.xlu0 %2743
    %vm2746 = vcmask 654912
    %2747 = vst.msk [vmem:[#allocation3] sm:$0xff] %vm2746, %v2744
    %s2748 = scalar_lea.vmem [#allocation2], 10
    %v2749 = vld [vmem:[%s2748] ss:$16 sm:$0x3]
    %v2750 = vld [vmem:[%s2748] ss:$16 sm:$0xc]
    %v2751 = vor.u32 %v2749, %v2750
    %v2752 = vld [vmem:[%s2748] ss:$16 sm:$0x30]
    %v2753 = vor.u32 %v2751, %v2752
    %v2754 = vld [vmem:[%s2748] ss:$16 sm:$0xc0]
    %v2755 = vor.u32 %v2753, %v2754
    %2757 = vrot.lane.b32.xlu0 %v2755, 80
    %v2758 = vpop.permute.xlu0 %2757
    %vm2760 = vcmask 720512
    %2761 = vst.msk [vmem:[#allocation3] sm:$0xff] %vm2760, %v2758
    %s2762 = scalar_lea.vmem [#allocation2], 11
    %v2763 = vld [vmem:[%s2762] ss:$16 sm:$0x3]
    %v2764 = vld [vmem:[%s2762] ss:$16 sm:$0xc]
    %v2765 = vor.u32 %v2763, %v2764
    %v2766 = vld [vmem:[%s2762] ss:$16 sm:$0x30]
    %v2767 = vor.u32 %v2765, %v2766
    %v2768 = vld [vmem:[%s2762] ss:$16 sm:$0xc0]
    %v2769 = vor.u32 %v2767, %v2768
    %2771 = vrot.lane.b32.xlu0 %v2769, 88
    %v2772 = vpop.permute.xlu0 %2771
    %vm2774 = vcmask 786112
    %2775 = vst.msk [vmem:[#allocation3] sm:$0xff] %vm2774, %v2772
    %s2776 = scalar_lea.vmem [#allocation2], 12
    %v2777 = vld [vmem:[%s2776] ss:$16 sm:$0x3]
    %v2778 = vld [vmem:[%s2776] ss:$16 sm:$0xc]
    %v2779 = vor.u32 %v2777, %v2778
    %v2780 = vld [vmem:[%s2776] ss:$16 sm:$0x30]
    %v2781 = vor.u32 %v2779, %v2780
    %v2782 = vld [vmem:[%s2776] ss:$16 sm:$0xc0]
    %v2783 = vor.u32 %v2781, %v2782
    %2785 = vrot.lane.b32.xlu0 %v2783, 96
    %v2786 = vpop.permute.xlu0 %2785
    %vm2788 = vcmask 851712
    %2789 = vst.msk [vmem:[#allocation3] sm:$0xff] %vm2788, %v2786
    %s2790 = scalar_lea.vmem [#allocation2], 13
    %v2791 = vld [vmem:[%s2790] ss:$16 sm:$0x3]
    %v2792 = vld [vmem:[%s2790] ss:$16 sm:$0xc]
    %v2793 = vor.u32 %v2791, %v2792
    %v2794 = vld [vmem:[%s2790] ss:$16 sm:$0x30]
    %v2795 = vor.u32 %v2793, %v2794
    %v2796 = vld [vmem:[%s2790] ss:$16 sm:$0xc0]
    %v2797 = vor.u32 %v2795, %v2796
    %2799 = vrot.lane.b32.xlu0 %v2797, 104
    %v2800 = vpop.permute.xlu0 %2799
    %vm2802 = vcmask 917312
    %2803 = vst.msk [vmem:[#allocation3] sm:$0xff] %vm2802, %v2800
    %s2804 = scalar_lea.vmem [#allocation2], 14
    %v2805 = vld [vmem:[%s2804] ss:$16 sm:$0x3]
    %v2806 = vld [vmem:[%s2804] ss:$16 sm:$0xc]
    %v2807 = vor.u32 %v2805, %v2806
    %v2808 = vld [vmem:[%s2804] ss:$16 sm:$0x30]
    %v2809 = vor.u32 %v2807, %v2808
    %v2810 = vld [vmem:[%s2804] ss:$16 sm:$0xc0]
    %v2811 = vor.u32 %v2809, %v2810
    %2813 = vrot.lane.b32.xlu0 %v2811, 112
    %v2814 = vpop.permute.xlu0 %2813
    %vm2816 = vcmask 982912
    %2817 = vst.msk [vmem:[#allocation3] sm:$0xff] %vm2816, %v2814
    %s2818 = scalar_lea.vmem [#allocation2], 15
    %v2819 = vld [vmem:[%s2818] ss:$16 sm:$0x3]
    %v2820 = vld [vmem:[%s2818] ss:$16 sm:$0xc]
    %v2821 = vor.u32 %v2819, %v2820
    %v2822 = vld [vmem:[%s2818] ss:$16 sm:$0x30]
    %v2823 = vor.u32 %v2821, %v2822
    %v2824 = vld [vmem:[%s2818] ss:$16 sm:$0xc0]
    %v2825 = vor.u32 %v2823, %v2824
    %2827 = vrot.lane.b32.xlu0 %v2825, 120
    %v2828 = vpop.permute.xlu0 %2827
    %vm2830 = vcmask 1048512
    %2831 = vst.msk [vmem:[#allocation3] sm:$0xff] %vm2830, %v2828
    // Predicated region
    $region22: #{tpu_custom_call.1} parent=1 // pred_check
      _
    $region23: #{tpu_custom_call.1} parent=1 // pred_check_branch
      %2833 = sbr.rel (0) target = $region25
    $region24: #{tpu_custom_call.1} parent=1 // pred_region
      %s2835 = ssub.s32 128, 128
      %2836 = vsyncadd [#allocation4], %s2835
      %s2838 = sshll.u32 [#allocation3], 4
      %s2839 = int_to_ptr.vmem [resolvable:$true] %s2838
      %2841 = dma.vmem_to_hbm [thread:$0]  %s2839, 128, %s5, [#allocation4]
    $region25: #{tpu_custom_call.1} parent=1 // pred_fallthru
      _
    // Predicated region
    $region26: #{tpu_custom_call.1} parent=1 // pred_check
      _
    $region27: #{tpu_custom_call.1} parent=1 // pred_check_branch
      %2843 = sbr.rel (0) target = $region29
    $region28: #{tpu_custom_call.1} parent=1 // pred_region
      %2844 = dma.done [#allocation4], 128
    $region29: #{tpu_custom_call.1} parent=1 // pred_fallthru
      _
    %2845 = vsyncpa [#allocation4], 1

</llo_original>
